<compile_context>
chip_gen: v5e
topology: v5e:2x2
jax: 0.10.0
libtpu: 0.0.40
codegen_flags: <defaults>
</compile_context>

<pallas_src>
import functools

import jax
import jax.numpy as jnp
from jax.experimental import pallas as pl
from jax.experimental.pallas import tpu as pltpu


def _round_up(x, m):
    return ((x + m - 1) // m) * m


# ---------------------------------------------------------------------------
# Fused Pallas kernel (factory closes over static sizes / layer count)
# ---------------------------------------------------------------------------
def _make_rcnn_kernel(*, num_layers, S, B, Hp, unroll_seq):
    Hp2, Hp4, Hp6, Hp8 = 2 * Hp, 4 * Hp, 6 * Hp, 8 * Hp

    def kernel(*refs):
        # refs: x, (wih_f, wih_b, whh, b) * L, fc_w_e, fc_w_o, fc_b,
        #       out, gx_scratch[, lay_scratch]
        x_ref = refs[0]
        p = 1
        layer_refs = []
        for _ in range(num_layers):
            layer_refs.append(refs[p:p + 4])
            p += 4
        fcw_e_ref, fcw_o_ref, fcb_ref = refs[p], refs[p + 1], refs[p + 2]
        out_ref = refs[p + 3]
        gx_ref = refs[p + 4]                                  # (S, B, 8Hp) f32
        lay_ref = refs[p + 5] if num_layers > 1 else None     # (S*B, 2Hp) bf16

        x_emb = x_ref[...]                     # (S*B, E) f32, time-major rows
        m_o = None

        for l in range(num_layers):
            wf_ref, wb_ref, whh_ref, b_ref = layer_refs[l]
            whh = whh_ref[...]                 # (2Hp, 8Hp) bf16, block-diagonal
            bias = b_ref[...]                  # (1, 8Hp)   f32
            last = l == num_layers - 1

            layer_in = x_emb.astype(jnp.bfloat16) if l == 0 else lay_ref[...]

            # --- prologue: hoisted input projections, pre-combined per step.
            # fwd/bwd weights occupy disjoint column groups, so combining the
            # two projections (and the bias) is a plain add, done ONCE here.
            xg_f = jnp.dot(layer_in, wf_ref[...],
                           preferred_element_type=jnp.float32) + bias
            xg_b = jnp.dot(layer_in, wb_ref[...],
                           preferred_element_type=jnp.float32)
            for s in range(S):                 # static stores, off critical path
                gx_ref[s] = (xg_f[s * B:(s + 1) * B, :]
                             + xg_b[(S - 1 - s) * B:(S - s) * B, :])

            # --- recurrence: one MXU dot + 3 EUP pushes per step.
            def step_math(gate_x, h, c):
                hg = jnp.dot(h.astype(jnp.bfloat16), whh,
                             preferred_element_type=jnp.float32)   # (B, 8Hp)
                gates = gate_x + hg
                sig = jax.nn.sigmoid(gates[:, 0:Hp6])   # i|f|o: one EUP slab
                g_g = jnp.tanh(gates[:, Hp6:Hp8])       # g:     one EUP slab
                c = sig[:, Hp2:Hp4] * c + sig[:, 0:Hp2] * g_g
                h = sig[:, Hp4:Hp6] * jnp.tanh(c)
                return h, c

            h = jnp.zeros((B, Hp2), jnp.float32)        # [h_fwd | h_bwd]
            c = jnp.zeros((B, Hp2), jnp.float32)
            m = jnp.zeros((B, Hp2), jnp.float32)        # ReLU follows -> 0-init

            if unroll_seq:
                for s in range(S):                      # fully unrolled (small S)
                    h, c = step_math(gx_ref[s], h, c)
                    if last:
                        # max over seq is permutation invariant -> bwd half needs
                        # no un-flip in time.
                        m = jnp.maximum(m, h)
                    else:
                        # time-aligned store for the next layer's input.
                        lay_ref[s * B:(s + 1) * B, 0:Hp] = (
                            h[:, 0:Hp].astype(jnp.bfloat16))
                        lay_ref[(S - 1 - s) * B:(S - s) * B, Hp:Hp2] = (
                            h[:, Hp:Hp2].astype(jnp.bfloat16))
                if last:
                    m_o = m
            else:
                # Large S: bounded unroll keeps the unrolled body inside the
                # 64-vreg file (no spill / compile-time blowup).
                if last:
                    def body(s, carry):
                        hh, cc, mm = carry
                        hh, cc = step_math(gx_ref[s], hh, cc)
                        return hh, cc, jnp.maximum(mm, hh)
                    _, _, m_o = jax.lax.fori_loop(0, S, body, (h, c, m), unroll=2)
                else:
                    def body(s, carry):
                        hh, cc = carry
                        hh, cc = step_math(gx_ref[s], hh, cc)
                        row = pl.multiple_of(s * B, B)
                        rrow = pl.multiple_of((S - 1 - s) * B, B)
                        lay_ref[pl.ds(row, B), 0:Hp] = (
                            hh[:, 0:Hp].astype(jnp.bfloat16))
                        lay_ref[pl.ds(rrow, B), Hp:Hp2] = (
                            hh[:, Hp:Hp2].astype(jnp.bfloat16))
                        return hh, cc
                    h, c = jax.lax.fori_loop(0, S, body, (h, c), unroll=2)

            # TODO(synk): inter-layer dropout (train mode only) not applied; eval semantics.

        # --- head: cat(embed, lstm) -> relu -> max over seq -> fc.
        # relu commutes with max (0-init folds the relu in); the fc is additive
        # over the two feature blocks, so the concat is fused away by splitting
        # the fc weight into (E, Cp) and (2Hp, Cp) halves.
        m_e = jnp.zeros((B, x_emb.shape[1]), jnp.float32)
        for s in range(S):
            m_e = jnp.maximum(m_e, x_emb[s * B:(s + 1) * B, :])
        out_ref[...] = (
            jnp.dot(m_e, fcw_e_ref[...], preferred_element_type=jnp.float32)
            + jnp.dot(m_o, fcw_o_ref[...], preferred_element_type=jnp.float32)
            + fcb_ref[...])

    return kernel


# ---------------------------------------------------------------------------
# Wrapper
# ---------------------------------------------------------------------------
_VMEM = pl.BlockSpec(memory_space=pltpu.MemorySpace.VMEM)


@functools.partial(jax.jit, static_argnames=("num_layers", "hidden", "num_classes"))
def rcnn_forward(x_ids, params, *, num_layers, hidden, num_classes):
    B, S = x_ids.shape
    E = params["emb"].shape[1]
    Hp = _round_up(hidden, 64)           # 2*Hp is a multiple of 128 (lane aligned)
    Cp = params["fc_b"].shape[1]         # num_classes padded to 128

    # Embedding gather + time-major flatten (row = s*B + b) is XLA glue.
    # TODO(synk): at larger vocab/embed, fuse the gather via PrefetchScalarGridSpec
    # + pl.Element row gather instead of jnp.take.
    embed = jnp.take(params["emb"], x_ids, axis=0)             # (B, S, E)
    x_tm = jnp.transpose(embed, (1, 0, 2)).reshape(S * B, E)   # (S*B, E)

    inputs = [x_tm]
    for l in range(num_layers):
        inputs += [params[f"l{l}_wih_f"], params[f"l{l}_wih_b"],
                   params[f"l{l}_whh"], params[f"l{l}_b"]]
    inputs += [params["fc_w_e"], params["fc_w_o"], params["fc_b"]]

    kernel = _make_rcnn_kernel(num_layers=num_layers, S=S, B=B, Hp=Hp,
                               unroll_seq=S <= 16)
    scratch = [pltpu.VMEM((S, B, 8 * Hp), jnp.float32)]        # pre-combined gates
    if num_layers > 1:
        scratch.append(pltpu.VMEM((S * B, 2 * Hp), jnp.bfloat16))

    # TODO(synk): for large B add a batch grid axis ("parallel") + BlockSpecs so the
    # work also shards across the 2 TensorCores on v7x; at these sizes the whole-array
    # VMEM residency is far below the 32 MiB scoped budget (safe on 64 MiB v7x too).
    out = pl.pallas_call(
        kernel,
        out_shape=jax.ShapeDtypeStruct((B, Cp), jnp.float32),
        in_specs=[_VMEM] * len(inputs),
        out_specs=_VMEM,
        scratch_shapes=scratch,
        compiler_params=pltpu.CompilerParams(vmem_limit_bytes=32 * 1024 * 1024),
    )(*inputs)
    return out[:, :num_classes]


# ---------------------------------------------------------------------------
# Parameter construction (PyTorch-style raw weights + kernel-layout weights)
# ---------------------------------------------------------------------------
def make_params(key, *, n_vocab, embed, hidden, num_layers, num_classes):
    H = hidden
    Hp = _round_up(hidden, 64)
    Cp = _round_up(num_classes, 128)
    keys = jax.random.split(key, 3 + 8 * num_layers)
    ki = iter(keys)

    def u(k, shape, scale):
        return jax.random.uniform(k, shape, jnp.float32, -scale, scale)

    raw = {"hidden": hidden, "num_layers": num_layers}
    params = {}

    # nn.Embedding(n_vocab, embed, padding_idx=n_vocab-1)
    emb_tbl = jax.random.normal(next(ki), (n_vocab, embed), jnp.float32)
    emb_tbl = emb_tbl.at[n_vocab - 1].set(0.0)
    raw["emb"] = emb_tbl
    params["emb"] = emb_tbl

    gate_perm = jnp.array([0, 1, 3, 2])     # pytorch [i f g o] -> kernel [i f o g]

    def reorder_pad_gates(w_t):             # (rows, 4H) -> (rows, 4, Hp)
        rows = w_t.shape[0]
        a = jnp.take(w_t.reshape(rows, 4, H), gate_perm, axis=1)
        return jnp.pad(a, ((0, 0), (0, 0), (0, Hp - H)))

    def place_direction(a, which):          # (rows, 4, Hp) -> (rows, 8Hp)
        rows = a.shape[0]
        out = jnp.zeros((rows, 4, 2, Hp), a.dtype)
        out = out.at[:, :, which, :].set(a)
        return out.reshape(rows, 8 * Hp)

    def pad_hidden_rows(a):                 # (2H, ...) -> (2Hp, ...)
        pad = ((0, Hp - H),) + ((0, 0),) * (a.ndim - 1)
        return jnp.concatenate([jnp.pad(a[:H], pad), jnp.pad(a[H:], pad)], axis=0)

    # nn.LSTM(embed, hidden, num_layers, bidirectional=True), gate order [i,f,g,o]
    s = 1.0 / (hidden ** 0.5)
    for l in range(num_layers):
        d_in = embed if l == 0 else 2 * hidden
        packed = {}
        for di, tag in enumerate(("fwd", "bwd")):
            w_ih = u(next(ki), (4 * H, d_in), s)
            w_hh = u(next(ki), (4 * H, H), s)
            b_ih = u(next(ki), (4 * H,), s)
            b_hh = u(next(ki), (4 * H,), s)
            raw[f"l{l}_{tag}_w_ih"] = w_ih
            raw[f"l{l}_{tag}_w_hh"] = w_hh
            raw[f"l{l}_{tag}_b"] = b_ih + b_hh

            # Input projection: other direction's columns are zero so the kernel
            # combines fwd/bwd with an add (projection is off the critical path).
            wih_t = reorder_pad_gates(w_ih.T)                  # (d_in, 4, Hp)
            if l > 0:
                wih_t = pad_hidden_rows(wih_t)                 # (2Hp, 4, Hp)
            params[f"l{l}_wih_{'f' if di == 0 else 'b'}"] = (
                place_direction(wih_t, di).astype(jnp.bfloat16))

            # Hidden weight, gate-padded and hidden-padded (padded units stay 0).
            whh_t = reorder_pad_gates(w_hh.T)                  # (H, 4, Hp)
            whh_t = jnp.pad(whh_t, ((0, Hp - H), (0, 0), (0, 0)))
            packed[f"whh_{tag}"] = place_direction(whh_t, di)  # (Hp, 8Hp)

            b_t = reorder_pad_gates((b_ih + b_hh).reshape(1, 4 * H))
            packed[f"b_{tag}"] = place_direction(b_t, di)      # (1, 8Hp)

        # Block-diagonal hidden weight: rows [0:Hp] = fwd, rows [Hp:2Hp] = bwd.
        # 2Hp=128 <= one MXU K pass on every generation for H <= 64.
        params[f"l{l}_whh"] = jnp.concatenate(
            [packed["whh_fwd"], packed["whh_bwd"]], axis=0).astype(jnp.bfloat16)
        params[f"l{l}_b"] = packed["b_fwd"] + packed["b_bwd"]   # (1, 8Hp) f32

    # nn.Linear(hidden*2 + embed, num_classes); cat order = (embed, lstm_out)
    fin = 2 * hidden + embed
    sf = 1.0 / (fin ** 0.5)
    fc_w = u(next(ki), (num_classes, fin), sf)
    fc_b = u(next(ki), (num_classes,), sf)
    raw["fc_w"] = fc_w
    raw["fc_b"] = fc_b

    params["fc_w_e"] = jnp.pad(fc_w[:, :embed].T,
                               ((0, 0), (0, Cp - num_classes)))       # (E, Cp)
    fcw_o = jnp.zeros((2 * Hp, num_classes), jnp.float32)
    fcw_o = fcw_o.at[:H, :].set(fc_w[:, embed:embed + H].T)
    fcw_o = fcw_o.at[Hp:Hp + H, :].set(fc_w[:, embed + H:].T)
    params["fc_w_o"] = jnp.pad(fcw_o, ((0, 0), (0, Cp - num_classes)))  # (2Hp, Cp)
    params["fc_b"] = jnp.pad(fc_b.reshape(1, num_classes),
                             ((0, 0), (0, Cp - num_classes)))           # (1, Cp)
    return params, raw


# ---------------------------------------------------------------------------
# Pure-JAX f32 reference (mirrors the PyTorch module, eval mode)
# ---------------------------------------------------------------------------
def rcnn_reference(x_ids, raw):
    H = raw["hidden"]
    embed = jnp.take(raw["emb"], x_ids, axis=0)              # (B, S, E)
    B, S, _ = embed.shape
    layer_in = embed
    for l in range(raw["num_layers"]):
        outs = []
        for tag in ("fwd", "bwd"):
            w_ih = raw[f"l{l}_{tag}_w_ih"]
            w_hh = raw[f"l{l}_{tag}_w_hh"]
            b = raw[f"l{l}_{tag}_b"]
            h = jnp.zeros((B, H), jnp.float32)
            c = jnp.zeros((B, H), jnp.float32)
            hs = [None] * S
            order = range(S) if tag == "fwd" else range(S - 1, -1, -1)
            for t in order:
                g = layer_in[:, t, :] @ w_ih.T + h @ w_hh.T + b
                i = jax.nn.sigmoid(g[:, 0:H])
                f = jax.nn.sigmoid(g[:, H:2 * H])
                gg = jnp.tanh(g[:, 2 * H:3 * H])
                o = jax.nn.sigmoid(g[:, 3 * H:4 * H])
                c = f * c + i * gg
                h = o * jnp.tanh(c)
                hs[t] = h
            outs.append(jnp.stack(hs, axis=1))               # (B, S, H)
        layer_in = jnp.concatenate(outs, axis=-1)            # (B, S, 2H)
    cat = jnp.concatenate([embed, layer_in], axis=-1)        # (B, S, E+2H)
    pooled = jnp.max(jax.nn.relu(cat), axis=1)               # (B, E+2H)
    return pooled @ raw["fc_w"].T + raw["fc_b"]


# ---------------------------------------------------------------------------
if __name__ == "__main__":
    N_VOCAB = 50
    EMBED = 32
    HIDDEN = 32
    PAD_SIZE = 8          # seq length == MaxPool1d kernel size
    NUM_CLASSES = 5
    BATCH = 2

    key = jax.random.PRNGKey(0)
    for num_layers in (1, 2):
        k_par, k_x = jax.random.split(jax.random.fold_in(key, num_layers))
        params, raw = make_params(k_par, n_vocab=N_VOCAB, embed=EMBED,
                                  hidden=HIDDEN, num_layers=num_layers,
                                  num_classes=NUM_CLASSES)
        x_ids = jax.random.randint(k_x, (BATCH, PAD_SIZE), 0, N_VOCAB,
                                   dtype=jnp.int32)

        out = rcnn_forward(x_ids, params, num_layers=num_layers,
                           hidden=HIDDEN, num_classes=NUM_CLASSES)
        out = jax.block_until_ready(out)
        assert out.shape == (BATCH, NUM_CLASSES), out.shape

        ref = jax.block_until_ready(rcnn_reference(x_ids, raw))
        assert jnp.allclose(out, ref, atol=5e-2, rtol=5e-2), (num_layers, out, ref)

    print("KERNEL_OK")
</pallas_src>

<mosaic_0001>
module attributes {stable_mosaic.version = 11 : i64} {
  func.func @kernel(%arg0: memref<16x32xf32, #tpu.memory_space<vmem>>, %arg1: memref<32x512xbf16, #tpu.memory_space<vmem>>, %arg2: memref<32x512xbf16, #tpu.memory_space<vmem>>, %arg3: memref<128x512xbf16, #tpu.memory_space<vmem>>, %arg4: memref<1x512xf32, #tpu.memory_space<vmem>>, %arg5: memref<32x128xf32, #tpu.memory_space<vmem>>, %arg6: memref<128x128xf32, #tpu.memory_space<vmem>>, %arg7: memref<1x128xf32, #tpu.memory_space<vmem>>, %arg8: memref<2x128xf32, #tpu.memory_space<vmem>>, %arg9: memref<8x2x512xf32, #tpu.memory_space<vmem>>) attributes {dimension_semantics = [], scalar_prefetch = 0 : i64, scratch_operands = 1 : i64, tpu.core_type = #tpu.core_type<tc>} {
    %c0 = arith.constant 0 : index
    %c0_0 = arith.constant 0 : index
    %0 = vector.load %arg0[%c0, %c0_0] : memref<16x32xf32, #tpu.memory_space<vmem>>, vector<16x32xf32>
    %c0_1 = arith.constant 0 : index
    %c0_2 = arith.constant 0 : index
    %1 = vector.load %arg3[%c0_1, %c0_2] : memref<128x512xbf16, #tpu.memory_space<vmem>>, vector<128x512xbf16>
    %c0_3 = arith.constant 0 : index
    %c0_4 = arith.constant 0 : index
    %2 = vector.load %arg4[%c0_3, %c0_4] : memref<1x512xf32, #tpu.memory_space<vmem>>, vector<1x512xf32>
    %3 = arith.truncf %0 : vector<16x32xf32> to vector<16x32xbf16>
    %c0_5 = arith.constant 0 : index
    %c0_6 = arith.constant 0 : index
    %4 = vector.load %arg1[%c0_5, %c0_6] : memref<32x512xbf16, #tpu.memory_space<vmem>>, vector<32x512xbf16>
    %cst = arith.constant dense<0.000000e+00> : vector<16x512xf32>
    %5 = tpu.matmul %3, %4, %cst {dimension_numbers = #tpu.dot_dimension_numbers<[1], [0], [0], [1], [0, 0, 1, 1], [], []>} : vector<16x32xbf16>, vector<32x512xbf16>, vector<16x512xf32> -> vector<16x512xf32>
    %6 = vector.broadcast %2 : vector<1x512xf32> to vector<16x512xf32>
    %7 = arith.addf %5, %6 : vector<16x512xf32>
    %c0_7 = arith.constant 0 : index
    %c0_8 = arith.constant 0 : index
    %8 = vector.load %arg2[%c0_7, %c0_8] : memref<32x512xbf16, #tpu.memory_space<vmem>>, vector<32x512xbf16>
    %cst_9 = arith.constant dense<0.000000e+00> : vector<16x512xf32>
    %9 = tpu.matmul %3, %8, %cst_9 {dimension_numbers = #tpu.dot_dimension_numbers<[1], [0], [0], [1], [0, 0, 1, 1], [], []>} : vector<16x32xbf16>, vector<32x512xbf16>, vector<16x512xf32> -> vector<16x512xf32>
    %10 = vector.extract_strided_slice %7 {offsets = [0, 0], sizes = [2, 512], strides = [1, 1]} : vector<16x512xf32> to vector<2x512xf32>
    %11 = vector.extract_strided_slice %9 {offsets = [14, 0], sizes = [2, 512], strides = [1, 1]} : vector<16x512xf32> to vector<2x512xf32>
    %12 = arith.addf %10, %11 : vector<2x512xf32>
    %c0_10 = arith.constant 0 : index
    %c0_11 = arith.constant 0 : index
    %c0_12 = arith.constant 0 : index
    %13 = vector.load %arg9[%c0_10, %c0_11, %c0_12] : memref<8x2x512xf32, #tpu.memory_space<vmem>>, vector<1x2x512xf32>
    %14 = vector.shape_cast %13 : vector<1x2x512xf32> to vector<2x512xf32>
    %15 = vector.shape_cast %12 : vector<2x512xf32> to vector<1x2x512xf32>
    tpu.vector_store %arg9[%c0_10, %c0_11, %c0_12], %15 {strides = array<i32>} : memref<8x2x512xf32, #tpu.memory_space<vmem>>, vector<1x2x512xf32>,
    %16 = vector.extract_strided_slice %7 {offsets = [2, 0], sizes = [2, 512], strides = [1, 1]} : vector<16x512xf32> to vector<2x512xf32>
    %17 = vector.extract_strided_slice %9 {offsets = [12, 0], sizes = [2, 512], strides = [1, 1]} : vector<16x512xf32> to vector<2x512xf32>
    %18 = arith.addf %16, %17 : vector<2x512xf32>
    %c1 = arith.constant 1 : index
    %c0_13 = arith.constant 0 : index
    %c0_14 = arith.constant 0 : index
    %19 = vector.load %arg9[%c1, %c0_13, %c0_14] : memref<8x2x512xf32, #tpu.memory_space<vmem>>, vector<1x2x512xf32>
    %20 = vector.shape_cast %19 : vector<1x2x512xf32> to vector<2x512xf32>
    %21 = vector.shape_cast %18 : vector<2x512xf32> to vector<1x2x512xf32>
    tpu.vector_store %arg9[%c1, %c0_13, %c0_14], %21 {strides = array<i32>} : memref<8x2x512xf32, #tpu.memory_space<vmem>>, vector<1x2x512xf32>,
    %22 = vector.extract_strided_slice %7 {offsets = [4, 0], sizes = [2, 512], strides = [1, 1]} : vector<16x512xf32> to vector<2x512xf32>
    %23 = vector.extract_strided_slice %9 {offsets = [10, 0], sizes = [2, 512], strides = [1, 1]} : vector<16x512xf32> to vector<2x512xf32>
    %24 = arith.addf %22, %23 : vector<2x512xf32>
    %c2 = arith.constant 2 : index
    %c0_15 = arith.constant 0 : index
    %c0_16 = arith.constant 0 : index
    %25 = vector.load %arg9[%c2, %c0_15, %c0_16] : memref<8x2x512xf32, #tpu.memory_space<vmem>>, vector<1x2x512xf32>
    %26 = vector.shape_cast %25 : vector<1x2x512xf32> to vector<2x512xf32>
    %27 = vector.shape_cast %24 : vector<2x512xf32> to vector<1x2x512xf32>
    tpu.vector_store %arg9[%c2, %c0_15, %c0_16], %27 {strides = array<i32>} : memref<8x2x512xf32, #tpu.memory_space<vmem>>, vector<1x2x512xf32>,
    %28 = vector.extract_strided_slice %7 {offsets = [6, 0], sizes = [2, 512], strides = [1, 1]} : vector<16x512xf32> to vector<2x512xf32>
    %29 = vector.extract_strided_slice %9 {offsets = [8, 0], sizes = [2, 512], strides = [1, 1]} : vector<16x512xf32> to vector<2x512xf32>
    %30 = arith.addf %28, %29 : vector<2x512xf32>
    %c3 = arith.constant 3 : index
    %c0_17 = arith.constant 0 : index
    %c0_18 = arith.constant 0 : index
    %31 = vector.load %arg9[%c3, %c0_17, %c0_18] : memref<8x2x512xf32, #tpu.memory_space<vmem>>, vector<1x2x512xf32>
    %32 = vector.shape_cast %31 : vector<1x2x512xf32> to vector<2x512xf32>
    %33 = vector.shape_cast %30 : vector<2x512xf32> to vector<1x2x512xf32>
    tpu.vector_store %arg9[%c3, %c0_17, %c0_18], %33 {strides = array<i32>} : memref<8x2x512xf32, #tpu.memory_space<vmem>>, vector<1x2x512xf32>,
    %34 = vector.extract_strided_slice %7 {offsets = [8, 0], sizes = [2, 512], strides = [1, 1]} : vector<16x512xf32> to vector<2x512xf32>
    %35 = vector.extract_strided_slice %9 {offsets = [6, 0], sizes = [2, 512], strides = [1, 1]} : vector<16x512xf32> to vector<2x512xf32>
    %36 = arith.addf %34, %35 : vector<2x512xf32>
    %c4 = arith.constant 4 : index
    %c0_19 = arith.constant 0 : index
    %c0_20 = arith.constant 0 : index
    %37 = vector.load %arg9[%c4, %c0_19, %c0_20] : memref<8x2x512xf32, #tpu.memory_space<vmem>>, vector<1x2x512xf32>
    %38 = vector.shape_cast %37 : vector<1x2x512xf32> to vector<2x512xf32>
    %39 = vector.shape_cast %36 : vector<2x512xf32> to vector<1x2x512xf32>
    tpu.vector_store %arg9[%c4, %c0_19, %c0_20], %39 {strides = array<i32>} : memref<8x2x512xf32, #tpu.memory_space<vmem>>, vector<1x2x512xf32>,
    %40 = vector.extract_strided_slice %7 {offsets = [10, 0], sizes = [2, 512], strides = [1, 1]} : vector<16x512xf32> to vector<2x512xf32>
    %41 = vector.extract_strided_slice %9 {offsets = [4, 0], sizes = [2, 512], strides = [1, 1]} : vector<16x512xf32> to vector<2x512xf32>
    %42 = arith.addf %40, %41 : vector<2x512xf32>
    %c5 = arith.constant 5 : index
    %c0_21 = arith.constant 0 : index
    %c0_22 = arith.constant 0 : index
    %43 = vector.load %arg9[%c5, %c0_21, %c0_22] : memref<8x2x512xf32, #tpu.memory_space<vmem>>, vector<1x2x512xf32>
    %44 = vector.shape_cast %43 : vector<1x2x512xf32> to vector<2x512xf32>
    %45 = vector.shape_cast %42 : vector<2x512xf32> to vector<1x2x512xf32>
    tpu.vector_store %arg9[%c5, %c0_21, %c0_22], %45 {strides = array<i32>} : memref<8x2x512xf32, #tpu.memory_space<vmem>>, vector<1x2x512xf32>,
    %46 = vector.extract_strided_slice %7 {offsets = [12, 0], sizes = [2, 512], strides = [1, 1]} : vector<16x512xf32> to vector<2x512xf32>
    %47 = vector.extract_strided_slice %9 {offsets = [2, 0], sizes = [2, 512], strides = [1, 1]} : vector<16x512xf32> to vector<2x512xf32>
    %48 = arith.addf %46, %47 : vector<2x512xf32>
    %c6 = arith.constant 6 : index
    %c0_23 = arith.constant 0 : index
    %c0_24 = arith.constant 0 : index
    %49 = vector.load %arg9[%c6, %c0_23, %c0_24] : memref<8x2x512xf32, #tpu.memory_space<vmem>>, vector<1x2x512xf32>
    %50 = vector.shape_cast %49 : vector<1x2x512xf32> to vector<2x512xf32>
    %51 = vector.shape_cast %48 : vector<2x512xf32> to vector<1x2x512xf32>
    tpu.vector_store %arg9[%c6, %c0_23, %c0_24], %51 {strides = array<i32>} : memref<8x2x512xf32, #tpu.memory_space<vmem>>, vector<1x2x512xf32>,
    %52 = vector.extract_strided_slice %7 {offsets = [14, 0], sizes = [2, 512], strides = [1, 1]} : vector<16x512xf32> to vector<2x512xf32>
    %53 = vector.extract_strided_slice %9 {offsets = [0, 0], sizes = [2, 512], strides = [1, 1]} : vector<16x512xf32> to vector<2x512xf32>
    %54 = arith.addf %52, %53 : vector<2x512xf32>
    %c7 = arith.constant 7 : index
    %c0_25 = arith.constant 0 : index
    %c0_26 = arith.constant 0 : index
    %55 = vector.load %arg9[%c7, %c0_25, %c0_26] : memref<8x2x512xf32, #tpu.memory_space<vmem>>, vector<1x2x512xf32>
    %56 = vector.shape_cast %55 : vector<1x2x512xf32> to vector<2x512xf32>
    %57 = vector.shape_cast %54 : vector<2x512xf32> to vector<1x2x512xf32>
    tpu.vector_store %arg9[%c7, %c0_25, %c0_26], %57 {strides = array<i32>} : memref<8x2x512xf32, #tpu.memory_space<vmem>>, vector<1x2x512xf32>,
    %cst_27 = arith.constant 0.000000e+00 : f32
    %58 = vector.broadcast %cst_27 : f32 to vector<2x128xf32>
    %cst_28 = arith.constant 0.000000e+00 : f32
    %59 = vector.broadcast %cst_28 : f32 to vector<2x128xf32>
    %cst_29 = arith.constant 0.000000e+00 : f32
    %60 = vector.broadcast %cst_29 : f32 to vector<2x128xf32>
    %c0_30 = arith.constant 0 : index
    %c0_31 = arith.constant 0 : index
    %c0_32 = arith.constant 0 : index
    %61 = vector.load %arg9[%c0_30, %c0_31, %c0_32] : memref<8x2x512xf32, #tpu.memory_space<vmem>>, vector<1x2x512xf32>
    %62 = vector.shape_cast %61 : vector<1x2x512xf32> to vector<2x512xf32>
    %63 = arith.truncf %58 : vector<2x128xf32> to vector<2x128xbf16>
    %cst_33 = arith.constant dense<0.000000e+00> : vector<2x512xf32>
    %64 = tpu.matmul %63, %1, %cst_33 {dimension_numbers = #tpu.dot_dimension_numbers<[1], [0], [0], [1], [0, 0, 1, 1], [], []>} : vector<2x128xbf16>, vector<128x512xbf16>, vector<2x512xf32> -> vector<2x512xf32>
    %65 = arith.addf %62, %64 : vector<2x512xf32>
    %66 = vector.extract_strided_slice %65 {offsets = [0, 0], sizes = [2, 384], strides = [1, 1]} : vector<2x512xf32> to vector<2x384xf32>
    %67 = arith.negf %66 : vector<2x384xf32>
    %68 = math.exp %67 : vector<2x384xf32>
    %cst_34 = arith.constant 1.000000e+00 : f32
    %69 = vector.broadcast %cst_34 : f32 to vector<2x384xf32>
    %70 = arith.addf %69, %68 : vector<2x384xf32>
    %71 = arith.divf %69, %70 : vector<2x384xf32>
    %72 = vector.extract_strided_slice %65 {offsets = [0, 384], sizes = [2, 128], strides = [1, 1]} : vector<2x512xf32> to vector<2x128xf32>
    %73 = math.tanh %72 : vector<2x128xf32>
    %74 = vector.extract_strided_slice %71 {offsets = [0, 128], sizes = [2, 128], strides = [1, 1]} : vector<2x384xf32> to vector<2x128xf32>
    %75 = arith.mulf %74, %59 : vector<2x128xf32>
    %76 = vector.extract_strided_slice %71 {offsets = [0, 0], sizes = [2, 128], strides = [1, 1]} : vector<2x384xf32> to vector<2x128xf32>
    %77 = arith.mulf %76, %73 : vector<2x128xf32>
    %78 = arith.addf %75, %77 : vector<2x128xf32>
    %79 = vector.extract_strided_slice %71 {offsets = [0, 256], sizes = [2, 128], strides = [1, 1]} : vector<2x384xf32> to vector<2x128xf32>
    %80 = math.tanh %78 : vector<2x128xf32>
    %81 = arith.mulf %79, %80 : vector<2x128xf32>
    %82 = arith.maximumf %60, %81 : vector<2x128xf32>
    %c1_35 = arith.constant 1 : index
    %c0_36 = arith.constant 0 : index
    %c0_37 = arith.constant 0 : index
    %83 = vector.load %arg9[%c1_35, %c0_36, %c0_37] : memref<8x2x512xf32, #tpu.memory_space<vmem>>, vector<1x2x512xf32>
    %84 = vector.shape_cast %83 : vector<1x2x512xf32> to vector<2x512xf32>
    %85 = arith.truncf %81 : vector<2x128xf32> to vector<2x128xbf16>
    %cst_38 = arith.constant dense<0.000000e+00> : vector<2x512xf32>
    %86 = tpu.matmul %85, %1, %cst_38 {dimension_numbers = #tpu.dot_dimension_numbers<[1], [0], [0], [1], [0, 0, 1, 1], [], []>} : vector<2x128xbf16>, vector<128x512xbf16>, vector<2x512xf32> -> vector<2x512xf32>
    %87 = arith.addf %84, %86 : vector<2x512xf32>
    %88 = vector.extract_strided_slice %87 {offsets = [0, 0], sizes = [2, 384], strides = [1, 1]} : vector<2x512xf32> to vector<2x384xf32>
    %89 = arith.negf %88 : vector<2x384xf32>
    %90 = math.exp %89 : vector<2x384xf32>
    %cst_39 = arith.constant 1.000000e+00 : f32
    %91 = vector.broadcast %cst_39 : f32 to vector<2x384xf32>
    %92 = arith.addf %91, %90 : vector<2x384xf32>
    %93 = arith.divf %91, %92 : vector<2x384xf32>
    %94 = vector.extract_strided_slice %87 {offsets = [0, 384], sizes = [2, 128], strides = [1, 1]} : vector<2x512xf32> to vector<2x128xf32>
    %95 = math.tanh %94 : vector<2x128xf32>
    %96 = vector.extract_strided_slice %93 {offsets = [0, 128], sizes = [2, 128], strides = [1, 1]} : vector<2x384xf32> to vector<2x128xf32>
    %97 = arith.mulf %96, %78 : vector<2x128xf32>
    %98 = vector.extract_strided_slice %93 {offsets = [0, 0], sizes = [2, 128], strides = [1, 1]} : vector<2x384xf32> to vector<2x128xf32>
    %99 = arith.mulf %98, %95 : vector<2x128xf32>
    %100 = arith.addf %97, %99 : vector<2x128xf32>
    %101 = vector.extract_strided_slice %93 {offsets = [0, 256], sizes = [2, 128], strides = [1, 1]} : vector<2x384xf32> to vector<2x128xf32>
    %102 = math.tanh %100 : vector<2x128xf32>
    %103 = arith.mulf %101, %102 : vector<2x128xf32>
    %104 = arith.maximumf %82, %103 : vector<2x128xf32>
    %c2_40 = arith.constant 2 : index
    %c0_41 = arith.constant 0 : index
    %c0_42 = arith.constant 0 : index
    %105 = vector.load %arg9[%c2_40, %c0_41, %c0_42] : memref<8x2x512xf32, #tpu.memory_space<vmem>>, vector<1x2x512xf32>
    %106 = vector.shape_cast %105 : vector<1x2x512xf32> to vector<2x512xf32>
    %107 = arith.truncf %103 : vector<2x128xf32> to vector<2x128xbf16>
    %cst_43 = arith.constant dense<0.000000e+00> : vector<2x512xf32>
    %108 = tpu.matmul %107, %1, %cst_43 {dimension_numbers = #tpu.dot_dimension_numbers<[1], [0], [0], [1], [0, 0, 1, 1], [], []>} : vector<2x128xbf16>, vector<128x512xbf16>, vector<2x512xf32> -> vector<2x512xf32>
    %109 = arith.addf %106, %108 : vector<2x512xf32>
    %110 = vector.extract_strided_slice %109 {offsets = [0, 0], sizes = [2, 384], strides = [1, 1]} : vector<2x512xf32> to vector<2x384xf32>
    %111 = arith.negf %110 : vector<2x384xf32>
    %112 = math.exp %111 : vector<2x384xf32>
    %cst_44 = arith.constant 1.000000e+00 : f32
    %113 = vector.broadcast %cst_44 : f32 to vector<2x384xf32>
    %114 = arith.addf %113, %112 : vector<2x384xf32>
    %115 = arith.divf %113, %114 : vector<2x384xf32>
    %116 = vector.extract_strided_slice %109 {offsets = [0, 384], sizes = [2, 128], strides = [1, 1]} : vector<2x512xf32> to vector<2x128xf32>
    %117 = math.tanh %116 : vector<2x128xf32>
    %118 = vector.extract_strided_slice %115 {offsets = [0, 128], sizes = [2, 128], strides = [1, 1]} : vector<2x384xf32> to vector<2x128xf32>
    %119 = arith.mulf %118, %100 : vector<2x128xf32>
    %120 = vector.extract_strided_slice %115 {offsets = [0, 0], sizes = [2, 128], strides = [1, 1]} : vector<2x384xf32> to vector<2x128xf32>
    %121 = arith.mulf %120, %117 : vector<2x128xf32>
    %122 = arith.addf %119, %121 : vector<2x128xf32>
    %123 = vector.extract_strided_slice %115 {offsets = [0, 256], sizes = [2, 128], strides = [1, 1]} : vector<2x384xf32> to vector<2x128xf32>
    %124 = math.tanh %122 : vector<2x128xf32>
    %125 = arith.mulf %123, %124 : vector<2x128xf32>
    %126 = arith.maximumf %104, %125 : vector<2x128xf32>
    %c3_45 = arith.constant 3 : index
    %c0_46 = arith.constant 0 : index
    %c0_47 = arith.constant 0 : index
    %127 = vector.load %arg9[%c3_45, %c0_46, %c0_47] : memref<8x2x512xf32, #tpu.memory_space<vmem>>, vector<1x2x512xf32>
    %128 = vector.shape_cast %127 : vector<1x2x512xf32> to vector<2x512xf32>
    %129 = arith.truncf %125 : vector<2x128xf32> to vector<2x128xbf16>
    %cst_48 = arith.constant dense<0.000000e+00> : vector<2x512xf32>
    %130 = tpu.matmul %129, %1, %cst_48 {dimension_numbers = #tpu.dot_dimension_numbers<[1], [0], [0], [1], [0, 0, 1, 1], [], []>} : vector<2x128xbf16>, vector<128x512xbf16>, vector<2x512xf32> -> vector<2x512xf32>
    %131 = arith.addf %128, %130 : vector<2x512xf32>
    %132 = vector.extract_strided_slice %131 {offsets = [0, 0], sizes = [2, 384], strides = [1, 1]} : vector<2x512xf32> to vector<2x384xf32>
    %133 = arith.negf %132 : vector<2x384xf32>
    %134 = math.exp %133 : vector<2x384xf32>
    %cst_49 = arith.constant 1.000000e+00 : f32
    %135 = vector.broadcast %cst_49 : f32 to vector<2x384xf32>
    %136 = arith.addf %135, %134 : vector<2x384xf32>
    %137 = arith.divf %135, %136 : vector<2x384xf32>
    %138 = vector.extract_strided_slice %131 {offsets = [0, 384], sizes = [2, 128], strides = [1, 1]} : vector<2x512xf32> to vector<2x128xf32>
    %139 = math.tanh %138 : vector<2x128xf32>
    %140 = vector.extract_strided_slice %137 {offsets = [0, 128], sizes = [2, 128], strides = [1, 1]} : vector<2x384xf32> to vector<2x128xf32>
    %141 = arith.mulf %140, %122 : vector<2x128xf32>
    %142 = vector.extract_strided_slice %137 {offsets = [0, 0], sizes = [2, 128], strides = [1, 1]} : vector<2x384xf32> to vector<2x128xf32>
    %143 = arith.mulf %142, %139 : vector<2x128xf32>
    %144 = arith.addf %141, %143 : vector<2x128xf32>
    %145 = vector.extract_strided_slice %137 {offsets = [0, 256], sizes = [2, 128], strides = [1, 1]} : vector<2x384xf32> to vector<2x128xf32>
    %146 = math.tanh %144 : vector<2x128xf32>
    %147 = arith.mulf %145, %146 : vector<2x128xf32>
    %148 = arith.maximumf %126, %147 : vector<2x128xf32>
    %c4_50 = arith.constant 4 : index
    %c0_51 = arith.constant 0 : index
    %c0_52 = arith.constant 0 : index
    %149 = vector.load %arg9[%c4_50, %c0_51, %c0_52] : memref<8x2x512xf32, #tpu.memory_space<vmem>>, vector<1x2x512xf32>
    %150 = vector.shape_cast %149 : vector<1x2x512xf32> to vector<2x512xf32>
    %151 = arith.truncf %147 : vector<2x128xf32> to vector<2x128xbf16>
    %cst_53 = arith.constant dense<0.000000e+00> : vector<2x512xf32>
    %152 = tpu.matmul %151, %1, %cst_53 {dimension_numbers = #tpu.dot_dimension_numbers<[1], [0], [0], [1], [0, 0, 1, 1], [], []>} : vector<2x128xbf16>, vector<128x512xbf16>, vector<2x512xf32> -> vector<2x512xf32>
    %153 = arith.addf %150, %152 : vector<2x512xf32>
    %154 = vector.extract_strided_slice %153 {offsets = [0, 0], sizes = [2, 384], strides = [1, 1]} : vector<2x512xf32> to vector<2x384xf32>
    %155 = arith.negf %154 : vector<2x384xf32>
    %156 = math.exp %155 : vector<2x384xf32>
    %cst_54 = arith.constant 1.000000e+00 : f32
    %157 = vector.broadcast %cst_54 : f32 to vector<2x384xf32>
    %158 = arith.addf %157, %156 : vector<2x384xf32>
    %159 = arith.divf %157, %158 : vector<2x384xf32>
    %160 = vector.extract_strided_slice %153 {offsets = [0, 384], sizes = [2, 128], strides = [1, 1]} : vector<2x512xf32> to vector<2x128xf32>
    %161 = math.tanh %160 : vector<2x128xf32>
    %162 = vector.extract_strided_slice %159 {offsets = [0, 128], sizes = [2, 128], strides = [1, 1]} : vector<2x384xf32> to vector<2x128xf32>
    %163 = arith.mulf %162, %144 : vector<2x128xf32>
    %164 = vector.extract_strided_slice %159 {offsets = [0, 0], sizes = [2, 128], strides = [1, 1]} : vector<2x384xf32> to vector<2x128xf32>
    %165 = arith.mulf %164, %161 : vector<2x128xf32>
    %166 = arith.addf %163, %165 : vector<2x128xf32>
    %167 = vector.extract_strided_slice %159 {offsets = [0, 256], sizes = [2, 128], strides = [1, 1]} : vector<2x384xf32> to vector<2x128xf32>
    %168 = math.tanh %166 : vector<2x128xf32>
    %169 = arith.mulf %167, %168 : vector<2x128xf32>
    %170 = arith.maximumf %148, %169 : vector<2x128xf32>
    %c5_55 = arith.constant 5 : index
    %c0_56 = arith.constant 0 : index
    %c0_57 = arith.constant 0 : index
    %171 = vector.load %arg9[%c5_55, %c0_56, %c0_57] : memref<8x2x512xf32, #tpu.memory_space<vmem>>, vector<1x2x512xf32>
    %172 = vector.shape_cast %171 : vector<1x2x512xf32> to vector<2x512xf32>
    %173 = arith.truncf %169 : vector<2x128xf32> to vector<2x128xbf16>
    %cst_58 = arith.constant dense<0.000000e+00> : vector<2x512xf32>
    %174 = tpu.matmul %173, %1, %cst_58 {dimension_numbers = #tpu.dot_dimension_numbers<[1], [0], [0], [1], [0, 0, 1, 1], [], []>} : vector<2x128xbf16>, vector<128x512xbf16>, vector<2x512xf32> -> vector<2x512xf32>
    %175 = arith.addf %172, %174 : vector<2x512xf32>
    %176 = vector.extract_strided_slice %175 {offsets = [0, 0], sizes = [2, 384], strides = [1, 1]} : vector<2x512xf32> to vector<2x384xf32>
    %177 = arith.negf %176 : vector<2x384xf32>
    %178 = math.exp %177 : vector<2x384xf32>
    %cst_59 = arith.constant 1.000000e+00 : f32
    %179 = vector.broadcast %cst_59 : f32 to vector<2x384xf32>
    %180 = arith.addf %179, %178 : vector<2x384xf32>
    %181 = arith.divf %179, %180 : vector<2x384xf32>
    %182 = vector.extract_strided_slice %175 {offsets = [0, 384], sizes = [2, 128], strides = [1, 1]} : vector<2x512xf32> to vector<2x128xf32>
    %183 = math.tanh %182 : vector<2x128xf32>
    %184 = vector.extract_strided_slice %181 {offsets = [0, 128], sizes = [2, 128], strides = [1, 1]} : vector<2x384xf32> to vector<2x128xf32>
    %185 = arith.mulf %184, %166 : vector<2x128xf32>
    %186 = vector.extract_strided_slice %181 {offsets = [0, 0], sizes = [2, 128], strides = [1, 1]} : vector<2x384xf32> to vector<2x128xf32>
    %187 = arith.mulf %186, %183 : vector<2x128xf32>
    %188 = arith.addf %185, %187 : vector<2x128xf32>
    %189 = vector.extract_strided_slice %181 {offsets = [0, 256], sizes = [2, 128], strides = [1, 1]} : vector<2x384xf32> to vector<2x128xf32>
    %190 = math.tanh %188 : vector<2x128xf32>
    %191 = arith.mulf %189, %190 : vector<2x128xf32>
    %192 = arith.maximumf %170, %191 : vector<2x128xf32>
    %c6_60 = arith.constant 6 : index
    %c0_61 = arith.constant 0 : index
    %c0_62 = arith.constant 0 : index
    %193 = vector.load %arg9[%c6_60, %c0_61, %c0_62] : memref<8x2x512xf32, #tpu.memory_space<vmem>>, vector<1x2x512xf32>
    %194 = vector.shape_cast %193 : vector<1x2x512xf32> to vector<2x512xf32>
    %195 = arith.truncf %191 : vector<2x128xf32> to vector<2x128xbf16>
    %cst_63 = arith.constant dense<0.000000e+00> : vector<2x512xf32>
    %196 = tpu.matmul %195, %1, %cst_63 {dimension_numbers = #tpu.dot_dimension_numbers<[1], [0], [0], [1], [0, 0, 1, 1], [], []>} : vector<2x128xbf16>, vector<128x512xbf16>, vector<2x512xf32> -> vector<2x512xf32>
    %197 = arith.addf %194, %196 : vector<2x512xf32>
    %198 = vector.extract_strided_slice %197 {offsets = [0, 0], sizes = [2, 384], strides = [1, 1]} : vector<2x512xf32> to vector<2x384xf32>
    %199 = arith.negf %198 : vector<2x384xf32>
    %200 = math.exp %199 : vector<2x384xf32>
    %cst_64 = arith.constant 1.000000e+00 : f32
    %201 = vector.broadcast %cst_64 : f32 to vector<2x384xf32>
    %202 = arith.addf %201, %200 : vector<2x384xf32>
    %203 = arith.divf %201, %202 : vector<2x384xf32>
    %204 = vector.extract_strided_slice %197 {offsets = [0, 384], sizes = [2, 128], strides = [1, 1]} : vector<2x512xf32> to vector<2x128xf32>
    %205 = math.tanh %204 : vector<2x128xf32>
    %206 = vector.extract_strided_slice %203 {offsets = [0, 128], sizes = [2, 128], strides = [1, 1]} : vector<2x384xf32> to vector<2x128xf32>
    %207 = arith.mulf %206, %188 : vector<2x128xf32>
    %208 = vector.extract_strided_slice %203 {offsets = [0, 0], sizes = [2, 128], strides = [1, 1]} : vector<2x384xf32> to vector<2x128xf32>
    %209 = arith.mulf %208, %205 : vector<2x128xf32>
    %210 = arith.addf %207, %209 : vector<2x128xf32>
    %211 = vector.extract_strided_slice %203 {offsets = [0, 256], sizes = [2, 128], strides = [1, 1]} : vector<2x384xf32> to vector<2x128xf32>
    %212 = math.tanh %210 : vector<2x128xf32>
    %213 = arith.mulf %211, %212 : vector<2x128xf32>
    %214 = arith.maximumf %192, %213 : vector<2x128xf32>
    %c7_65 = arith.constant 7 : index
    %c0_66 = arith.constant 0 : index
    %c0_67 = arith.constant 0 : index
    %215 = vector.load %arg9[%c7_65, %c0_66, %c0_67] : memref<8x2x512xf32, #tpu.memory_space<vmem>>, vector<1x2x512xf32>
    %216 = vector.shape_cast %215 : vector<1x2x512xf32> to vector<2x512xf32>
    %217 = arith.truncf %213 : vector<2x128xf32> to vector<2x128xbf16>
    %cst_68 = arith.constant dense<0.000000e+00> : vector<2x512xf32>
    %218 = tpu.matmul %217, %1, %cst_68 {dimension_numbers = #tpu.dot_dimension_numbers<[1], [0], [0], [1], [0, 0, 1, 1], [], []>} : vector<2x128xbf16>, vector<128x512xbf16>, vector<2x512xf32> -> vector<2x512xf32>
    %219 = arith.addf %216, %218 : vector<2x512xf32>
    %220 = vector.extract_strided_slice %219 {offsets = [0, 0], sizes = [2, 384], strides = [1, 1]} : vector<2x512xf32> to vector<2x384xf32>
    %221 = arith.negf %220 : vector<2x384xf32>
    %222 = math.exp %221 : vector<2x384xf32>
    %cst_69 = arith.constant 1.000000e+00 : f32
    %223 = vector.broadcast %cst_69 : f32 to vector<2x384xf32>
    %224 = arith.addf %223, %222 : vector<2x384xf32>
    %225 = arith.divf %223, %224 : vector<2x384xf32>
    %226 = vector.extract_strided_slice %219 {offsets = [0, 384], sizes = [2, 128], strides = [1, 1]} : vector<2x512xf32> to vector<2x128xf32>
    %227 = math.tanh %226 : vector<2x128xf32>
    %228 = vector.extract_strided_slice %225 {offsets = [0, 128], sizes = [2, 128], strides = [1, 1]} : vector<2x384xf32> to vector<2x128xf32>
    %229 = arith.mulf %228, %210 : vector<2x128xf32>
    %230 = vector.extract_strided_slice %225 {offsets = [0, 0], sizes = [2, 128], strides = [1, 1]} : vector<2x384xf32> to vector<2x128xf32>
    %231 = arith.mulf %230, %227 : vector<2x128xf32>
    %232 = arith.addf %229, %231 : vector<2x128xf32>
    %233 = vector.extract_strided_slice %225 {offsets = [0, 256], sizes = [2, 128], strides = [1, 1]} : vector<2x384xf32> to vector<2x128xf32>
    %234 = math.tanh %232 : vector<2x128xf32>
    %235 = arith.mulf %233, %234 : vector<2x128xf32>
    %236 = arith.maximumf %214, %235 : vector<2x128xf32>
    %cst_70 = arith.constant 0.000000e+00 : f32
    %237 = vector.broadcast %cst_70 : f32 to vector<2x32xf32>
    %238 = vector.extract_strided_slice %0 {offsets = [0, 0], sizes = [2, 32], strides = [1, 1]} : vector<16x32xf32> to vector<2x32xf32>
    %239 = arith.maximumf %237, %238 : vector<2x32xf32>
    %240 = vector.extract_strided_slice %0 {offsets = [2, 0], sizes = [2, 32], strides = [1, 1]} : vector<16x32xf32> to vector<2x32xf32>
    %241 = arith.maximumf %239, %240 : vector<2x32xf32>
    %242 = vector.extract_strided_slice %0 {offsets = [4, 0], sizes = [2, 32], strides = [1, 1]} : vector<16x32xf32> to vector<2x32xf32>
    %243 = arith.maximumf %241, %242 : vector<2x32xf32>
    %244 = vector.extract_strided_slice %0 {offsets = [6, 0], sizes = [2, 32], strides = [1, 1]} : vector<16x32xf32> to vector<2x32xf32>
    %245 = arith.maximumf %243, %244 : vector<2x32xf32>
    %246 = vector.extract_strided_slice %0 {offsets = [8, 0], sizes = [2, 32], strides = [1, 1]} : vector<16x32xf32> to vector<2x32xf32>
    %247 = arith.maximumf %245, %246 : vector<2x32xf32>
    %248 = vector.extract_strided_slice %0 {offsets = [10, 0], sizes = [2, 32], strides = [1, 1]} : vector<16x32xf32> to vector<2x32xf32>
    %249 = arith.maximumf %247, %248 : vector<2x32xf32>
    %250 = vector.extract_strided_slice %0 {offsets = [12, 0], sizes = [2, 32], strides = [1, 1]} : vector<16x32xf32> to vector<2x32xf32>
    %251 = arith.maximumf %249, %250 : vector<2x32xf32>
    %252 = vector.extract_strided_slice %0 {offsets = [14, 0], sizes = [2, 32], strides = [1, 1]} : vector<16x32xf32> to vector<2x32xf32>
    %253 = arith.maximumf %251, %252 : vector<2x32xf32>
    %c0_71 = arith.constant 0 : index
    %c0_72 = arith.constant 0 : index
    %254 = vector.load %arg5[%c0_71, %c0_72] : memref<32x128xf32, #tpu.memory_space<vmem>>, vector<32x128xf32>
    %cst_73 = arith.constant dense<0.000000e+00> : vector<2x128xf32>
    %255 = tpu.matmul %253, %254, %cst_73 {dimension_numbers = #tpu.dot_dimension_numbers<[1], [0], [0], [1], [0, 0, 1, 1], [], []>} : vector<2x32xf32>, vector<32x128xf32>, vector<2x128xf32> -> vector<2x128xf32>
    %c0_74 = arith.constant 0 : index
    %c0_75 = arith.constant 0 : index
    %256 = vector.load %arg6[%c0_74, %c0_75] : memref<128x128xf32, #tpu.memory_space<vmem>>, vector<128x128xf32>
    %cst_76 = arith.constant dense<0.000000e+00> : vector<2x128xf32>
    %257 = tpu.matmul %236, %256, %cst_76 {dimension_numbers = #tpu.dot_dimension_numbers<[1], [0], [0], [1], [0, 0, 1, 1], [], []>} : vector<2x128xf32>, vector<128x128xf32>, vector<2x128xf32> -> vector<2x128xf32>
    %258 = arith.addf %255, %257 : vector<2x128xf32>
    %c0_77 = arith.constant 0 : index
    %c0_78 = arith.constant 0 : index
    %259 = vector.load %arg7[%c0_77, %c0_78] : memref<1x128xf32, #tpu.memory_space<vmem>>, vector<1x128xf32>
    %260 = vector.broadcast %259 : vector<1x128xf32> to vector<2x128xf32>
    %261 = arith.addf %258, %260 : vector<2x128xf32>
    %c0_79 = arith.constant 0 : index
    %c0_80 = arith.constant 0 : index
    %262 = vector.load %arg8[%c0_79, %c0_80] : memref<2x128xf32, #tpu.memory_space<vmem>>, vector<2x128xf32>
    tpu.vector_store %arg8[%c0_79, %c0_80], %261 {strides = array<i32>} : memref<2x128xf32, #tpu.memory_space<vmem>>, vector<2x128xf32>,
    return
  }
}

</mosaic_0001>

<llo_original>
// kernel: rcnn_forward.1
$region0: #{rcnn_forward.1}
  #allocation0 [shape = 'u32[]', space=smem, size = 0x4, offset = 0x4, fixed_abs, tag = 'smem constant byte address 0x4 - core index']
  #allocation1 [shape = 'u32[72,128]{1,0:T(1,128)}', space=vmem, size = 0x9000, scoped, tag = 'internal scratch']
  #allocation2 [shape = 'f32[8,2,512]{2,1,0:T(2,128)}', space=vmem, size = 0x8000, scoped, tag = 'scratch operand']
  %s0 = inlined_call_operand.vmem [shape: f32[16,32], index: 0, kind: input, shape index: {}]
  %s1 = inlined_call_operand.hbm [shape: bf16[32,512], index: 1, kind: input, shape index: {}]
  %s2 = inlined_call_operand.hbm [shape: bf16[32,512], index: 2, kind: input, shape index: {}]
  %s3 = inlined_call_operand.vmem [shape: bf16[128,512], index: 3, kind: input, shape index: {}]
  %s4 = inlined_call_operand.hbm [shape: f32[1,512], index: 4, kind: input, shape index: {}]
  %s5 = inlined_call_operand.vmem [shape: f32[32,128], index: 5, kind: input, shape index: {}]
  %s6 = inlined_call_operand.hbm [shape: f32[128,128], index: 6, kind: input, shape index: {}]
  %s7 = inlined_call_operand.vmem [shape: f32[1,128], index: 7, kind: input, shape index: {}]
  %s8 = inlined_call_operand.hbm [shape: f32[2,128], index: 8, kind: output, shape index: {}]
  %s9 = sld [smem:[#allocation0]]
  $region58: #{rcnn_forward.1} parent=0
    _
  %s11 = ssub.s32 1, %s9
  %s12 = scalar_select 0, %s11, %s9
  $region1: #{rcnn_forward.1} parent=0
    #allocation3 [shape = 'u8[32768]{0}', space=vmem, size = 0x8000, scoped, tag = 'input window, operand 1, single buffered']
    #allocation4 [shape = 's32[1]{0}', space=sflag, size = 0x4, scoped, tag = 'scoped memory for rcnn_forward.1']
    #allocation5 [shape = 's32[1]{0}', space=sflag, size = 0x4, scoped, tag = 'scoped memory for rcnn_forward.1']
    #allocation6 [shape = 'u8[32768]{0}', space=vmem, size = 0x8000, scoped, tag = 'input window, operand 2, single buffered']
    #allocation7 [shape = 's32[1]{0}', space=sflag, size = 0x4, scoped, tag = 'scoped memory for rcnn_forward.1']
    #allocation8 [shape = 'u8[2048]{0}', space=vmem, size = 0x800, scoped, tag = 'input window, operand 4, single buffered']
    #allocation9 [shape = 'u8[65536]{0}', space=vmem, size = 0x10000, scoped, tag = 'input window, operand 6, single buffered']
    #allocation10 [shape = 's32[1]{0}', space=sflag, size = 0x4, scoped, tag = 'scoped memory for rcnn_forward.1']
    #allocation11 [shape = 'u8[1024]{0}', space=vmem, size = 0x400, scoped, tag = 'output window, operand 0, single buffered']
    %13 = vsyncpa [#allocation4], 0
    %14 = vsyncpa [#allocation7], 0
    %15 = vsyncpa [#allocation10], 0
    %16 = vsyncpa [#allocation5], 0
    // Predicated region
    $region2: #{rcnn_forward.1} parent=1 // pred_check
      _
    $region3: #{rcnn_forward.1} parent=1 // pred_check_branch
      %18 = sbr.rel (0) target = $region5
    $region4: #{rcnn_forward.1} parent=1 // pred_region
      _
    $region5: #{rcnn_forward.1} parent=1 // pred_fallthru
      _
    // Predicated region
    $region6: #{rcnn_forward.1} parent=1 // pred_check
      _
    $region7: #{rcnn_forward.1} parent=1 // pred_check_branch
      %20 = sbr.rel (0) target = $region9
    $region8: #{rcnn_forward.1} parent=1 // pred_region
      %22 = vsyncadd [#allocation4], 0
      %s23 = sshll.u32 %s1, 4
      %s24 = int_to_ptr.hbm [resolvable:$true] %s23
      %s25 = sshll.u32 [#allocation3], 4
      %s26 = int_to_ptr.vmem [resolvable:$true] %s25
      %31 = dma.hbm_to_vmem [thread:$0]  %s24, 1024, %s26, [#allocation4], 256, 256, 16
    $region9: #{rcnn_forward.1} parent=1 // pred_fallthru
      _
    // Predicated region
    $region10: #{rcnn_forward.1} parent=1 // pred_check
      _
    $region11: #{rcnn_forward.1} parent=1 // pred_check_branch
      %33 = sbr.rel (0) target = $region13
    $region12: #{rcnn_forward.1} parent=1 // pred_region
      %35 = vsyncadd [#allocation7], 0
      %s36 = sshll.u32 %s2, 4
      %s37 = int_to_ptr.hbm [resolvable:$true] %s36
      %s38 = sshll.u32 [#allocation6], 4
      %s39 = int_to_ptr.vmem [resolvable:$true] %s38
      %44 = dma.hbm_to_vmem [thread:$0]  %s37, 1024, %s39, [#allocation7], 256, 256, 16
    $region13: #{rcnn_forward.1} parent=1 // pred_fallthru
      _
    // Predicated region
    $region14: #{rcnn_forward.1} parent=1 // pred_check
      _
    $region15: #{rcnn_forward.1} parent=1 // pred_check_branch
      %46 = sbr.rel (0) target = $region17
    $region16: #{rcnn_forward.1} parent=1 // pred_region
      _
    $region17: #{rcnn_forward.1} parent=1 // pred_fallthru
      _
    // Predicated region
    $region18: #{rcnn_forward.1} parent=1 // pred_check
      _
    $region19: #{rcnn_forward.1} parent=1 // pred_check_branch
      %48 = sbr.rel (0) target = $region21
    $region20: #{rcnn_forward.1} parent=1 // pred_region
      %50 = vsyncadd [#allocation7], 0
      %s52 = sshll.u32 %s4, 4
      %s53 = int_to_ptr.hbm [resolvable:$true] %s52
      %s54 = sshll.u32 [#allocation8], 4
      %s55 = int_to_ptr.vmem [resolvable:$true] %s54
      %57 = dma.hbm_to_vmem [thread:$0]  %s53, 64, %s55, [#allocation7]
    $region21: #{rcnn_forward.1} parent=1 // pred_fallthru
      _
    // Predicated region
    $region22: #{rcnn_forward.1} parent=1 // pred_check
      _
    $region23: #{rcnn_forward.1} parent=1 // pred_check_branch
      %59 = sbr.rel (0) target = $region25
    $region24: #{rcnn_forward.1} parent=1 // pred_region
      _
    $region25: #{rcnn_forward.1} parent=1 // pred_fallthru
      _
    // Predicated region
    $region26: #{rcnn_forward.1} parent=1 // pred_check
      _
    $region27: #{rcnn_forward.1} parent=1 // pred_check_branch
      %61 = sbr.rel (0) target = $region29
    $region28: #{rcnn_forward.1} parent=1 // pred_region
      %63 = vsyncadd [#allocation10], 0
      %s64 = sshll.u32 %s6, 4
      %s65 = int_to_ptr.hbm [resolvable:$true] %s64
      %s66 = sshll.u32 [#allocation9], 4
      %s67 = int_to_ptr.vmem [resolvable:$true] %s66
      %72 = dma.hbm_to_vmem [thread:$0]  %s65, 2048, %s67, [#allocation10], 128, 128, 8
    $region29: #{rcnn_forward.1} parent=1 // pred_fallthru
      _
    // Predicated region
    $region30: #{rcnn_forward.1} parent=1 // pred_check
      _
    $region31: #{rcnn_forward.1} parent=1 // pred_check_branch
      %74 = sbr.rel (0) target = $region33
    $region32: #{rcnn_forward.1} parent=1 // pred_region
      _
    $region33: #{rcnn_forward.1} parent=1 // pred_fallthru
      _
    // Predicated region
    $region34: #{rcnn_forward.1} parent=1 // pred_check
      _
    $region35: #{rcnn_forward.1} parent=1 // pred_check_branch
      %76 = sbr.rel (0) target = $region37
    $region36: #{rcnn_forward.1} parent=1 // pred_region
      %78 = dma.done [#allocation4], 1024
    $region37: #{rcnn_forward.1} parent=1 // pred_fallthru
      _
    // Predicated region
    $region38: #{rcnn_forward.1} parent=1 // pred_check
      _
    $region39: #{rcnn_forward.1} parent=1 // pred_check_branch
      %80 = sbr.rel (0) target = $region41
    $region40: #{rcnn_forward.1} parent=1 // pred_region
      %82 = dma.done [#allocation7], 1024
    $region41: #{rcnn_forward.1} parent=1 // pred_fallthru
      _
    // Predicated region
    $region42: #{rcnn_forward.1} parent=1 // pred_check
      _
    $region43: #{rcnn_forward.1} parent=1 // pred_check_branch
      %84 = sbr.rel (0) target = $region45
    $region44: #{rcnn_forward.1} parent=1 // pred_region
      %86 = dma.done [#allocation7], 64
    $region45: #{rcnn_forward.1} parent=1 // pred_fallthru
      _
    // Predicated region
    $region46: #{rcnn_forward.1} parent=1 // pred_check
      _
    $region47: #{rcnn_forward.1} parent=1 // pred_check_branch
      %88 = sbr.rel (0) target = $region49
    $region48: #{rcnn_forward.1} parent=1 // pred_region
      %90 = dma.done [#allocation10], 2048
    $region49: #{rcnn_forward.1} parent=1 // pred_fallthru
      _
    %v92 = vld [vmem:[%s0] sm:$0xff]
    %v93 = vld [vmem:[%s0 + $0x8] sm:$0xff]
    %v94 = vld [vmem:[%s3] sm:$0xff]
    %v95 = vld [vmem:[%s3 + $0x8] sm:$0xff]
    %v96 = vld [vmem:[%s3 + $0x10] sm:$0xff]
    %v97 = vld [vmem:[%s3 + $0x18] sm:$0xff]
    %v98 = vld [vmem:[%s3 + $0x20] sm:$0xff]
    %v99 = vld [vmem:[%s3 + $0x28] sm:$0xff]
    %v100 = vld [vmem:[%s3 + $0x30] sm:$0xff]
    %v101 = vld [vmem:[%s3 + $0x38] sm:$0xff]
    %v102 = vld [vmem:[%s3 + $0x40] sm:$0xff]
    %v103 = vld [vmem:[%s3 + $0x48] sm:$0xff]
    %v104 = vld [vmem:[%s3 + $0x50] sm:$0xff]
    %v105 = vld [vmem:[%s3 + $0x58] sm:$0xff]
    %v106 = vld [vmem:[%s3 + $0x60] sm:$0xff]
    %v107 = vld [vmem:[%s3 + $0x68] sm:$0xff]
    %v108 = vld [vmem:[%s3 + $0x70] sm:$0xff]
    %v109 = vld [vmem:[%s3 + $0x78] sm:$0xff]
    %v110 = vld [vmem:[%s3 + $0x80] sm:$0xff]
    %v111 = vld [vmem:[%s3 + $0x88] sm:$0xff]
    %v112 = vld [vmem:[%s3 + $0x90] sm:$0xff]
    %v113 = vld [vmem:[%s3 + $0x98] sm:$0xff]
    %v114 = vld [vmem:[%s3 + $0xa0] sm:$0xff]
    %v115 = vld [vmem:[%s3 + $0xa8] sm:$0xff]
    %v116 = vld [vmem:[%s3 + $0xb0] sm:$0xff]
    %v117 = vld [vmem:[%s3 + $0xb8] sm:$0xff]
    %v118 = vld [vmem:[%s3 + $0xc0] sm:$0xff]
    %v119 = vld [vmem:[%s3 + $0xc8] sm:$0xff]
    %v120 = vld [vmem:[%s3 + $0xd0] sm:$0xff]
    %v121 = vld [vmem:[%s3 + $0xd8] sm:$0xff]
    %v122 = vld [vmem:[%s3 + $0xe0] sm:$0xff]
    %v123 = vld [vmem:[%s3 + $0xe8] sm:$0xff]
    %v124 = vld [vmem:[%s3 + $0xf0] sm:$0xff]
    %v125 = vld [vmem:[%s3 + $0xf8] sm:$0xff]
    %v126 = vld [vmem:[#allocation8] sm:$0xf]
    %v127 = vpack.c.bf16 %v93, %v92
    %v128 = vld [vmem:[#allocation3] sm:$0xff]
    %v129 = vld [vmem:[#allocation3 + $0x8] sm:$0xff]
    %v130 = vld [vmem:[#allocation3 + $0x10] sm:$0xff]
    %v131 = vld [vmem:[#allocation3 + $0x18] sm:$0xff]
    %v132 = vld [vmem:[#allocation3 + $0x20] sm:$0xff]
    %v133 = vld [vmem:[#allocation3 + $0x28] sm:$0xff]
    %v134 = vld [vmem:[#allocation3 + $0x30] sm:$0xff]
    %v135 = vld [vmem:[#allocation3 + $0x38] sm:$0xff]
    %v137 = vperm.slane %v126, 0
    %v138 = vperm.slane %v126, 1
    %v139 = vperm.slane %v126, 2
    %v140 = vperm.slane %v126, 3
    %v153 = vunpack.c.l.b16 %v128
    %v154 = vunpack.c.h.b16 %v128
    %v155 = vunpack.c.l.b16 %v129
    %v156 = vunpack.c.h.b16 %v129
    %v157 = vunpack.c.l.b16 %v130
    %v158 = vunpack.c.h.b16 %v130
    %v159 = vunpack.c.l.b16 %v131
    %v160 = vunpack.c.h.b16 %v131
    %v161 = vunpack.c.l.b16 %v132
    %v162 = vunpack.c.h.b16 %v132
    %v163 = vunpack.c.l.b16 %v133
    %v164 = vunpack.c.h.b16 %v133
    %v165 = vunpack.c.l.b16 %v134
    %v166 = vunpack.c.h.b16 %v134
    %v167 = vunpack.c.l.b16 %v135
    %v168 = vunpack.c.h.b16 %v135
    %v169 = vpack.c.b16 %v157, %v153
    %v170 = vpack.c.b16 %v158, %v154
    %v171 = vpack.c.b16 %v159, %v155
    %v172 = vpack.c.b16 %v160, %v156
    %v173 = vpack.c.b16 %v165, %v161
    %v174 = vpack.c.b16 %v166, %v162
    %v175 = vpack.c.b16 %v167, %v163
    %v176 = vpack.c.b16 %v168, %v164
    %vm185 = vcmask 261120
    %v187 = vsel %vm185, %v127, 0
    %189 = vmatpush.bf16.msra.mxu0 0
    %190 = vmatpush.bf16.msra.mxu0 0
    %191 = vmatpush.bf16.msra.mxu0 0
    %192 = vmatpush.bf16.msra.mxu0 0
    %193 = vmatpush.bf16.msra.mxu0 0
    %194 = vmatpush.bf16.msra.mxu0 0
    %195 = vmatpush.bf16.msra.mxu0 %v173
    %196 = vmatpush.bf16.msra.mxu0 %v169
    %197 = vmatmul.bf16.gmra.mxu0 %v187
    %v198 = vpop.f32.mrf.mxu0
    %v199 = vadd.f32 %v137, %v198
    %v200 = vpop.f32.mrf.mxu0
    %v201 = vadd.f32 %v137, %v200
    %202 = vdwg.mxu0
    %203 = vmatpush.bf16.msra.mxu0 0
    %204 = vmatpush.bf16.msra.mxu0 0
    %205 = vmatpush.bf16.msra.mxu0 0
    %206 = vmatpush.bf16.msra.mxu0 0
    %207 = vmatpush.bf16.msra.mxu0 0
    %208 = vmatpush.bf16.msra.mxu0 0
    %209 = vmatpush.bf16.msra.mxu0 %v174
    %210 = vmatpush.bf16.msra.mxu0 %v170
    %211 = vmatmul.bf16.gmra.mxu0 %v187
    %v212 = vpop.f32.mrf.mxu0
    %v213 = vadd.f32 %v138, %v212
    %v214 = vpop.f32.mrf.mxu0
    %v215 = vadd.f32 %v138, %v214
    %216 = vdwg.mxu0
    %217 = vmatpush.bf16.msra.mxu0 0
    %218 = vmatpush.bf16.msra.mxu0 0
    %219 = vmatpush.bf16.msra.mxu0 0
    %220 = vmatpush.bf16.msra.mxu0 0
    %221 = vmatpush.bf16.msra.mxu0 0
    %222 = vmatpush.bf16.msra.mxu0 0
    %223 = vmatpush.bf16.msra.mxu0 %v175
    %224 = vmatpush.bf16.msra.mxu0 %v171
    %225 = vmatmul.bf16.gmra.mxu0 %v187
    %v226 = vpop.f32.mrf.mxu0
    %v227 = vadd.f32 %v139, %v226
    %v228 = vpop.f32.mrf.mxu0
    %v229 = vadd.f32 %v139, %v228
    %230 = vdwg.mxu0
    %231 = vmatpush.bf16.msra.mxu0 0
    %232 = vmatpush.bf16.msra.mxu0 0
    %233 = vmatpush.bf16.msra.mxu0 0
    %234 = vmatpush.bf16.msra.mxu0 0
    %235 = vmatpush.bf16.msra.mxu0 0
    %236 = vmatpush.bf16.msra.mxu0 0
    %237 = vmatpush.bf16.msra.mxu0 %v176
    %238 = vmatpush.bf16.msra.mxu0 %v172
    %239 = vmatmul.bf16.gmra.mxu0 %v187
    %v240 = vpop.f32.mrf.mxu0
    %v241 = vadd.f32 %v140, %v240
    %v242 = vpop.f32.mrf.mxu0
    %v243 = vadd.f32 %v140, %v242
    %244 = vdwg.mxu0
    %v245 = vld [vmem:[#allocation6] sm:$0xff]
    %v246 = vld [vmem:[#allocation6 + $0x8] sm:$0xff]
    %v247 = vld [vmem:[#allocation6 + $0x10] sm:$0xff]
    %v248 = vld [vmem:[#allocation6 + $0x18] sm:$0xff]
    %v249 = vld [vmem:[#allocation6 + $0x20] sm:$0xff]
    %v250 = vld [vmem:[#allocation6 + $0x28] sm:$0xff]
    %v251 = vld [vmem:[#allocation6 + $0x30] sm:$0xff]
    %v252 = vld [vmem:[#allocation6 + $0x38] sm:$0xff]
    %v261 = vunpack.c.l.b16 %v245
    %v262 = vunpack.c.h.b16 %v245
    %v263 = vunpack.c.l.b16 %v246
    %v264 = vunpack.c.h.b16 %v246
    %v265 = vunpack.c.l.b16 %v247
    %v266 = vunpack.c.h.b16 %v247
    %v267 = vunpack.c.l.b16 %v248
    %v268 = vunpack.c.h.b16 %v248
    %v269 = vunpack.c.l.b16 %v249
    %v270 = vunpack.c.h.b16 %v249
    %v271 = vunpack.c.l.b16 %v250
    %v272 = vunpack.c.h.b16 %v250
    %v273 = vunpack.c.l.b16 %v251
    %v274 = vunpack.c.h.b16 %v251
    %v275 = vunpack.c.l.b16 %v252
    %v276 = vunpack.c.h.b16 %v252
    %v277 = vpack.c.b16 %v265, %v261
    %v278 = vpack.c.b16 %v266, %v262
    %v279 = vpack.c.b16 %v267, %v263
    %v280 = vpack.c.b16 %v268, %v264
    %v281 = vpack.c.b16 %v273, %v269
    %v282 = vpack.c.b16 %v274, %v270
    %v283 = vpack.c.b16 %v275, %v271
    %v284 = vpack.c.b16 %v276, %v272
    %293 = vmatpush.bf16.msra.mxu0 0
    %294 = vmatpush.bf16.msra.mxu0 0
    %295 = vmatpush.bf16.msra.mxu0 0
    %296 = vmatpush.bf16.msra.mxu0 0
    %297 = vmatpush.bf16.msra.mxu0 0
    %298 = vmatpush.bf16.msra.mxu0 0
    %299 = vmatpush.bf16.msra.mxu0 %v281
    %300 = vmatpush.bf16.msra.mxu0 %v277
    %301 = vmatmul.bf16.gmra.mxu0 %v187
    %v302 = vpop.f32.mrf.mxu0
    %v303 = vadd.f32 0.0, %v302
    %v304 = vpop.f32.mrf.mxu0
    %v305 = vadd.f32 0.0, %v304
    %306 = vdwg.mxu0
    %307 = vmatpush.bf16.msra.mxu0 0
    %308 = vmatpush.bf16.msra.mxu0 0
    %309 = vmatpush.bf16.msra.mxu0 0
    %310 = vmatpush.bf16.msra.mxu0 0
    %311 = vmatpush.bf16.msra.mxu0 0
    %312 = vmatpush.bf16.msra.mxu0 0
    %313 = vmatpush.bf16.msra.mxu0 %v282
    %314 = vmatpush.bf16.msra.mxu0 %v278
    %315 = vmatmul.bf16.gmra.mxu0 %v187
    %v316 = vpop.f32.mrf.mxu0
    %v317 = vadd.f32 0.0, %v316
    %v318 = vpop.f32.mrf.mxu0
    %v319 = vadd.f32 0.0, %v318
    %320 = vdwg.mxu0
    %321 = vmatpush.bf16.msra.mxu0 0
    %322 = vmatpush.bf16.msra.mxu0 0
    %323 = vmatpush.bf16.msra.mxu0 0
    %324 = vmatpush.bf16.msra.mxu0 0
    %325 = vmatpush.bf16.msra.mxu0 0
    %326 = vmatpush.bf16.msra.mxu0 0
    %327 = vmatpush.bf16.msra.mxu0 %v283
    %328 = vmatpush.bf16.msra.mxu0 %v279
    %329 = vmatmul.bf16.gmra.mxu0 %v187
    %v330 = vpop.f32.mrf.mxu0
    %v331 = vadd.f32 0.0, %v330
    %v332 = vpop.f32.mrf.mxu0
    %v333 = vadd.f32 0.0, %v332
    %334 = vdwg.mxu0
    %335 = vmatpush.bf16.msra.mxu0 0
    %336 = vmatpush.bf16.msra.mxu0 0
    %337 = vmatpush.bf16.msra.mxu0 0
    %338 = vmatpush.bf16.msra.mxu0 0
    %339 = vmatpush.bf16.msra.mxu0 0
    %340 = vmatpush.bf16.msra.mxu0 0
    %341 = vmatpush.bf16.msra.mxu0 %v284
    %342 = vmatpush.bf16.msra.mxu0 %v280
    %343 = vmatmul.bf16.gmra.mxu0 %v187
    %v344 = vpop.f32.mrf.mxu0
    %v345 = vadd.f32 0.0, %v344
    %v346 = vpop.f32.mrf.mxu0
    %v347 = vadd.f32 0.0, %v346
    %348 = vdwg.mxu0
    %v353 = vrot.slane %v305, 6
    %v354 = vrot.slane %v319, 6
    %v355 = vrot.slane %v333, 6
    %v356 = vrot.slane %v347, 6
    %v361 = vadd.f32 %v199, %v353
    %v362 = vadd.f32 %v213, %v354
    %v363 = vadd.f32 %v227, %v355
    %v364 = vadd.f32 %v241, %v356
    %v369 = vrot.slane %v362, 6
    %v370 = vrot.slane %v363, 4
    %v371 = vrot.slane %v364, 2
    %vm372 = vcmask 1041408
    %v373 = vsel %vm372, %v361, %v369
    %vm374 = vcmask 1045508
    %v375 = vsel %vm374, %v370, %v371
    %vm376 = vcmask 1043456
    %v377 = vsel %vm376, %v373, %v375
    %379 = vst [vmem:[#allocation2] sm:$0xff] %v377
    %v380 = vrot.slane %v305, 2
    %v381 = vrot.slane %v319, 2
    %v382 = vrot.slane %v333, 2
    %v383 = vrot.slane %v347, 2
    %v388 = vadd.f32 %v199, %v380
    %v389 = vadd.f32 %v213, %v381
    %v390 = vadd.f32 %v227, %v382
    %v391 = vadd.f32 %v241, %v383
    %396 = vst.sshfl [vmem:[#allocation1] sm:$0xff pattern:$0x73625140] %v388
    %397 = vst.sshfl [vmem:[#allocation1 + $0x8] sm:$0xff pattern:$0x73625140] %v389
    %398 = vst.sshfl [vmem:[#allocation1 + $0x10] sm:$0xff pattern:$0x73625140] %v390
    %399 = vst.sshfl [vmem:[#allocation1 + $0x18] sm:$0xff pattern:$0x73625140] %v391
    %s400 = scalar_lea.vmem [#allocation1], 1
    %v401 = vld [vmem:[%s400] ss:$4 sm:$0xff]
    %s403 = scalar_lea.vmem [#allocation2], 8
    %404 = vst [vmem:[%s403] sm:$0xff] %v401
    %405 = vst.sshfl [vmem:[#allocation1] sm:$0xff pattern:$0x73625140] %v361
    %406 = vst.sshfl [vmem:[#allocation1 + $0x8] sm:$0xff pattern:$0x73625140] %v362
    %407 = vst.sshfl [vmem:[#allocation1 + $0x10] sm:$0xff pattern:$0x73625140] %v363
    %408 = vst.sshfl [vmem:[#allocation1 + $0x18] sm:$0xff pattern:$0x73625140] %v364
    %s409 = scalar_lea.vmem [#allocation1], 2
    %v410 = vld [vmem:[%s409] ss:$4 sm:$0xff]
    %s412 = scalar_lea.vmem [#allocation2], 16
    %413 = vst [vmem:[%s412] sm:$0xff] %v410
    %414 = vst.sshfl [vmem:[#allocation1] sm:$0xff pattern:$0x73625140] %v388
    %415 = vst.sshfl [vmem:[#allocation1 + $0x8] sm:$0xff pattern:$0x73625140] %v389
    %416 = vst.sshfl [vmem:[#allocation1 + $0x10] sm:$0xff pattern:$0x73625140] %v390
    %417 = vst.sshfl [vmem:[#allocation1 + $0x18] sm:$0xff pattern:$0x73625140] %v391
    %s418 = scalar_lea.vmem [#allocation1], 3
    %v419 = vld [vmem:[%s418] ss:$4 sm:$0xff]
    %s421 = scalar_lea.vmem [#allocation2], 24
    %422 = vst [vmem:[%s421] sm:$0xff] %v419
    %v427 = vrot.slane %v303, 6
    %v428 = vrot.slane %v317, 6
    %v429 = vrot.slane %v331, 6
    %v430 = vrot.slane %v345, 6
    %v435 = vadd.f32 %v201, %v427
    %v436 = vadd.f32 %v215, %v428
    %v437 = vadd.f32 %v229, %v429
    %v438 = vadd.f32 %v243, %v430
    %v443 = vrot.slane %v436, 6
    %v444 = vrot.slane %v437, 4
    %v445 = vrot.slane %v438, 2
    %v446 = vsel %vm372, %v435, %v443
    %v447 = vsel %vm374, %v444, %v445
    %v448 = vsel %vm376, %v446, %v447
    %s450 = scalar_lea.vmem [#allocation2], 32
    %451 = vst [vmem:[%s450] sm:$0xff] %v448
    %v452 = vrot.slane %v303, 2
    %v453 = vrot.slane %v317, 2
    %v454 = vrot.slane %v331, 2
    %v455 = vrot.slane %v345, 2
    %v460 = vadd.f32 %v201, %v452
    %v461 = vadd.f32 %v215, %v453
    %v462 = vadd.f32 %v229, %v454
    %v463 = vadd.f32 %v243, %v455
    %468 = vst.sshfl [vmem:[#allocation1] sm:$0xff pattern:$0x73625140] %v460
    %469 = vst.sshfl [vmem:[#allocation1 + $0x8] sm:$0xff pattern:$0x73625140] %v461
    %470 = vst.sshfl [vmem:[#allocation1 + $0x10] sm:$0xff pattern:$0x73625140] %v462
    %471 = vst.sshfl [vmem:[#allocation1 + $0x18] sm:$0xff pattern:$0x73625140] %v463
    %s472 = scalar_lea.vmem [#allocation1], 1
    %v473 = vld [vmem:[%s472] ss:$4 sm:$0xff]
    %s475 = scalar_lea.vmem [#allocation2], 40
    %476 = vst [vmem:[%s475] sm:$0xff] %v473
    %477 = vst.sshfl [vmem:[#allocation1] sm:$0xff pattern:$0x73625140] %v435
    %478 = vst.sshfl [vmem:[#allocation1 + $0x8] sm:$0xff pattern:$0x73625140] %v436
    %479 = vst.sshfl [vmem:[#allocation1 + $0x10] sm:$0xff pattern:$0x73625140] %v437
    %480 = vst.sshfl [vmem:[#allocation1 + $0x18] sm:$0xff pattern:$0x73625140] %v438
    %s481 = scalar_lea.vmem [#allocation1], 2
    %v482 = vld [vmem:[%s481] ss:$4 sm:$0xff]
    %s484 = scalar_lea.vmem [#allocation2], 48
    %485 = vst [vmem:[%s484] sm:$0xff] %v482
    %486 = vst.sshfl [vmem:[#allocation1] sm:$0xff pattern:$0x73625140] %v460
    %487 = vst.sshfl [vmem:[#allocation1 + $0x8] sm:$0xff pattern:$0x73625140] %v461
    %488 = vst.sshfl [vmem:[#allocation1 + $0x10] sm:$0xff pattern:$0x73625140] %v462
    %489 = vst.sshfl [vmem:[#allocation1 + $0x18] sm:$0xff pattern:$0x73625140] %v463
    %s490 = scalar_lea.vmem [#allocation1], 3
    %v491 = vld [vmem:[%s490] ss:$4 sm:$0xff]
    %s493 = scalar_lea.vmem [#allocation2], 56
    %494 = vst [vmem:[%s493] sm:$0xff] %v491
    %v495 = vld [vmem:[#allocation2] sm:$0xff]
    %v528 = vunpack.c.l.b16 %v94
    %v529 = vunpack.c.h.b16 %v94
    %v530 = vunpack.c.l.b16 %v95
    %v531 = vunpack.c.h.b16 %v95
    %v532 = vunpack.c.l.b16 %v96
    %v533 = vunpack.c.h.b16 %v96
    %v534 = vunpack.c.l.b16 %v97
    %v535 = vunpack.c.h.b16 %v97
    %v536 = vunpack.c.l.b16 %v98
    %v537 = vunpack.c.h.b16 %v98
    %v538 = vunpack.c.l.b16 %v99
    %v539 = vunpack.c.h.b16 %v99
    %v540 = vunpack.c.l.b16 %v100
    %v541 = vunpack.c.h.b16 %v100
    %v542 = vunpack.c.l.b16 %v101
    %v543 = vunpack.c.h.b16 %v101
    %v544 = vunpack.c.l.b16 %v102
    %v545 = vunpack.c.h.b16 %v102
    %v546 = vunpack.c.l.b16 %v103
    %v547 = vunpack.c.h.b16 %v103
    %v548 = vunpack.c.l.b16 %v104
    %v549 = vunpack.c.h.b16 %v104
    %v550 = vunpack.c.l.b16 %v105
    %v551 = vunpack.c.h.b16 %v105
    %v552 = vunpack.c.l.b16 %v106
    %v553 = vunpack.c.h.b16 %v106
    %v554 = vunpack.c.l.b16 %v107
    %v555 = vunpack.c.h.b16 %v107
    %v556 = vunpack.c.l.b16 %v108
    %v557 = vunpack.c.h.b16 %v108
    %v558 = vunpack.c.l.b16 %v109
    %v559 = vunpack.c.h.b16 %v109
    %v560 = vunpack.c.l.b16 %v110
    %v561 = vunpack.c.h.b16 %v110
    %v562 = vunpack.c.l.b16 %v111
    %v563 = vunpack.c.h.b16 %v111
    %v564 = vunpack.c.l.b16 %v112
    %v565 = vunpack.c.h.b16 %v112
    %v566 = vunpack.c.l.b16 %v113
    %v567 = vunpack.c.h.b16 %v113
    %v568 = vunpack.c.l.b16 %v114
    %v569 = vunpack.c.h.b16 %v114
    %v570 = vunpack.c.l.b16 %v115
    %v571 = vunpack.c.h.b16 %v115
    %v572 = vunpack.c.l.b16 %v116
    %v573 = vunpack.c.h.b16 %v116
    %v574 = vunpack.c.l.b16 %v117
    %v575 = vunpack.c.h.b16 %v117
    %v576 = vunpack.c.l.b16 %v118
    %v577 = vunpack.c.h.b16 %v118
    %v578 = vunpack.c.l.b16 %v119
    %v579 = vunpack.c.h.b16 %v119
    %v580 = vunpack.c.l.b16 %v120
    %v581 = vunpack.c.h.b16 %v120
    %v582 = vunpack.c.l.b16 %v121
    %v583 = vunpack.c.h.b16 %v121
    %v584 = vunpack.c.l.b16 %v122
    %v585 = vunpack.c.h.b16 %v122
    %v586 = vunpack.c.l.b16 %v123
    %v587 = vunpack.c.h.b16 %v123
    %v588 = vunpack.c.l.b16 %v124
    %v589 = vunpack.c.h.b16 %v124
    %v590 = vunpack.c.l.b16 %v125
    %v591 = vunpack.c.h.b16 %v125
    %v592 = vpack.c.b16 %v532, %v528
    %v593 = vpack.c.b16 %v533, %v529
    %v594 = vpack.c.b16 %v534, %v530
    %v595 = vpack.c.b16 %v535, %v531
    %v596 = vpack.c.b16 %v540, %v536
    %v597 = vpack.c.b16 %v541, %v537
    %v598 = vpack.c.b16 %v542, %v538
    %v599 = vpack.c.b16 %v543, %v539
    %v600 = vpack.c.b16 %v548, %v544
    %v601 = vpack.c.b16 %v549, %v545
    %v602 = vpack.c.b16 %v550, %v546
    %v603 = vpack.c.b16 %v551, %v547
    %v604 = vpack.c.b16 %v556, %v552
    %v605 = vpack.c.b16 %v557, %v553
    %v606 = vpack.c.b16 %v558, %v554
    %v607 = vpack.c.b16 %v559, %v555
    %v608 = vpack.c.b16 %v564, %v560
    %v609 = vpack.c.b16 %v565, %v561
    %v610 = vpack.c.b16 %v566, %v562
    %v611 = vpack.c.b16 %v567, %v563
    %v612 = vpack.c.b16 %v572, %v568
    %v613 = vpack.c.b16 %v573, %v569
    %v614 = vpack.c.b16 %v574, %v570
    %v615 = vpack.c.b16 %v575, %v571
    %v616 = vpack.c.b16 %v580, %v576
    %v617 = vpack.c.b16 %v581, %v577
    %v618 = vpack.c.b16 %v582, %v578
    %v619 = vpack.c.b16 %v583, %v579
    %v620 = vpack.c.b16 %v588, %v584
    %v621 = vpack.c.b16 %v589, %v585
    %v622 = vpack.c.b16 %v590, %v586
    %v623 = vpack.c.b16 %v591, %v587
    %656 = vmatpush.bf16.msra.mxu0 %v620
    %657 = vmatpush.bf16.msra.mxu0 %v616
    %658 = vmatpush.bf16.msra.mxu0 %v612
    %659 = vmatpush.bf16.msra.mxu0 %v608
    %660 = vmatpush.bf16.msra.mxu0 %v604
    %661 = vmatpush.bf16.msra.mxu0 %v600
    %662 = vmatpush.bf16.msra.mxu0 %v596
    %663 = vmatpush.bf16.msra.mxu0 %v592
    %664 = vmatmul.bf16.gmra.mxu0 0
    %v665 = vpop.f32.mrf.mxu0
    %v666 = vadd.f32 0.0, %v665
    %v667 = vpop.f32.mrf.mxu0
    %668 = vdwg.mxu0
    %669 = vmatpush.bf16.msra.mxu0 %v621
    %670 = vmatpush.bf16.msra.mxu0 %v617
    %671 = vmatpush.bf16.msra.mxu0 %v613
    %672 = vmatpush.bf16.msra.mxu0 %v609
    %673 = vmatpush.bf16.msra.mxu0 %v605
    %674 = vmatpush.bf16.msra.mxu0 %v601
    %675 = vmatpush.bf16.msra.mxu0 %v597
    %676 = vmatpush.bf16.msra.mxu0 %v593
    %677 = vmatmul.bf16.gmra.mxu0 0
    %v678 = vpop.f32.mrf.mxu0
    %v679 = vadd.f32 0.0, %v678
    %v680 = vpop.f32.mrf.mxu0
    %681 = vdwg.mxu0
    %682 = vmatpush.bf16.msra.mxu0 %v622
    %683 = vmatpush.bf16.msra.mxu0 %v618
    %684 = vmatpush.bf16.msra.mxu0 %v614
    %685 = vmatpush.bf16.msra.mxu0 %v610
    %686 = vmatpush.bf16.msra.mxu0 %v606
    %687 = vmatpush.bf16.msra.mxu0 %v602
    %688 = vmatpush.bf16.msra.mxu0 %v598
    %689 = vmatpush.bf16.msra.mxu0 %v594
    %690 = vmatmul.bf16.gmra.mxu0 0
    %v691 = vpop.f32.mrf.mxu0
    %v692 = vadd.f32 0.0, %v691
    %v693 = vpop.f32.mrf.mxu0
    %694 = vdwg.mxu0
    %695 = vmatpush.bf16.msra.mxu0 %v623
    %696 = vmatpush.bf16.msra.mxu0 %v619
    %697 = vmatpush.bf16.msra.mxu0 %v615
    %698 = vmatpush.bf16.msra.mxu0 %v611
    %699 = vmatpush.bf16.msra.mxu0 %v607
    %700 = vmatpush.bf16.msra.mxu0 %v603
    %701 = vmatpush.bf16.msra.mxu0 %v599
    %702 = vmatpush.bf16.msra.mxu0 %v595
    %703 = vmatmul.bf16.gmra.mxu0 0
    %v704 = vpop.f32.mrf.mxu0
    %v705 = vadd.f32 0.0, %v704
    %v706 = vpop.f32.mrf.mxu0
    %707 = vdwg.mxu0
    %v712 = vrot.slane %v679, 6
    %v713 = vrot.slane %v692, 4
    %v714 = vrot.slane %v705, 2
    %v715 = vsel %vm372, %v666, %v712
    %v716 = vsel %vm374, %v713, %v714
    %v717 = vsel %vm376, %v715, %v716
    %v719 = vadd.f32 %v495, %v717
    %v720 = vxor.u32 %v719, 2147483648
    %v721 = vmul.f32 %v720, 1.442695
    %v722 = vpow.pop %v721
    %v723 = vadd.f32 %v722, 1.0
    %v724 = vrcp.pop %v723
    %v725 = vmul.f32 %v723, %v724
    %v726 = vsub.f32 1.0, %v725
    %v727 = vmul.f32 %v724, %v726
    %v728 = vadd.f32 %v724, %v727
    %vm729 = vweird.f32 %v723
    %vm730 = vweird.f32 %v724
    %vm731 = vmor %vm729, %vm730
    %v732 = vsel %vm731, %v724, %v728
    %v733 = vand.u32 2147483647, %v723
    %vm734 = vcmp.eq.f32.partialorder %v733, 8.507059e+37
    %v735 = vand.u32 %v723, 2147483648
    %v736 = vor.u32 1.1754944e-38, %v735
    %v737 = vsel %vm734, %v736, %v732
    %v738 = vmul.f32 1.0, %v737
    %v740 = vrot.slane %v719, 6
    %v742 = vtanh.pop %v740
    %v744 = vrot.slane %v738, 2
    %v746 = vmul.f32 %v744, 0.0
    %v747 = vmul.f32 %v738, %v742
    %v748 = vadd.f32 %v746, %v747
    %v749 = vtanh.pop %v748
    %v750 = vrot.slane %v738, 4
    %v752 = vmul.f32 %v750, %v749
    %v753 = vmax.f32 %v752, 0.0
    %v754 = vld [vmem:[%s403] sm:$0xff]
    %v755 = vpack.c.bf16 %v752, %v752
    %756 = vmatpush.bf16.msra.mxu0 %v620
    %757 = vmatpush.bf16.msra.mxu0 %v616
    %758 = vmatpush.bf16.msra.mxu0 %v612
    %759 = vmatpush.bf16.msra.mxu0 %v608
    %760 = vmatpush.bf16.msra.mxu0 %v604
    %761 = vmatpush.bf16.msra.mxu0 %v600
    %762 = vmatpush.bf16.msra.mxu0 %v596
    %763 = vmatpush.bf16.msra.mxu0 %v592
    %764 = vmatmul.bf16.gmra.mxu0 %v755
    %v765 = vpop.f32.mrf.mxu0
    %v766 = vadd.f32 0.0, %v765
    %v767 = vpop.f32.mrf.mxu0
    %768 = vdwg.mxu0
    %769 = vmatpush.bf16.msra.mxu0 %v621
    %770 = vmatpush.bf16.msra.mxu0 %v617
    %771 = vmatpush.bf16.msra.mxu0 %v613
    %772 = vmatpush.bf16.msra.mxu0 %v609
    %773 = vmatpush.bf16.msra.mxu0 %v605
    %774 = vmatpush.bf16.msra.mxu0 %v601
    %775 = vmatpush.bf16.msra.mxu0 %v597
    %776 = vmatpush.bf16.msra.mxu0 %v593
    %777 = vmatmul.bf16.gmra.mxu0 %v755
    %v778 = vpop.f32.mrf.mxu0
    %v779 = vadd.f32 0.0, %v778
    %v780 = vpop.f32.mrf.mxu0
    %781 = vdwg.mxu0
    %782 = vmatpush.bf16.msra.mxu0 %v622
    %783 = vmatpush.bf16.msra.mxu0 %v618
    %784 = vmatpush.bf16.msra.mxu0 %v614
    %785 = vmatpush.bf16.msra.mxu0 %v610
    %786 = vmatpush.bf16.msra.mxu0 %v606
    %787 = vmatpush.bf16.msra.mxu0 %v602
    %788 = vmatpush.bf16.msra.mxu0 %v598
    %789 = vmatpush.bf16.msra.mxu0 %v594
    %790 = vmatmul.bf16.gmra.mxu0 %v755
    %v791 = vpop.f32.mrf.mxu0
    %v792 = vadd.f32 0.0, %v791
    %v793 = vpop.f32.mrf.mxu0
    %794 = vdwg.mxu0
    %795 = vmatpush.bf16.msra.mxu0 %v623
    %796 = vmatpush.bf16.msra.mxu0 %v619
    %797 = vmatpush.bf16.msra.mxu0 %v615
    %798 = vmatpush.bf16.msra.mxu0 %v611
    %799 = vmatpush.bf16.msra.mxu0 %v607
    %800 = vmatpush.bf16.msra.mxu0 %v603
    %801 = vmatpush.bf16.msra.mxu0 %v599
    %802 = vmatpush.bf16.msra.mxu0 %v595
    %803 = vmatmul.bf16.gmra.mxu0 %v755
    %v804 = vpop.f32.mrf.mxu0
    %v805 = vadd.f32 0.0, %v804
    %v806 = vpop.f32.mrf.mxu0
    %807 = vdwg.mxu0
    %v812 = vrot.slane %v779, 6
    %v813 = vrot.slane %v792, 4
    %v814 = vrot.slane %v805, 2
    %v815 = vsel %vm372, %v766, %v812
    %v816 = vsel %vm374, %v813, %v814
    %v817 = vsel %vm376, %v815, %v816
    %v819 = vadd.f32 %v754, %v817
    %v820 = vxor.u32 %v819, 2147483648
    %v821 = vmul.f32 %v820, 1.442695
    %v822 = vpow.pop %v821
    %v823 = vadd.f32 %v822, 1.0
    %v824 = vrcp.pop %v823
    %v825 = vmul.f32 %v823, %v824
    %v826 = vsub.f32 1.0, %v825
    %v827 = vmul.f32 %v824, %v826
    %v828 = vadd.f32 %v824, %v827
    %vm829 = vweird.f32 %v823
    %vm830 = vweird.f32 %v824
    %vm831 = vmor %vm829, %vm830
    %v832 = vsel %vm831, %v824, %v828
    %v833 = vand.u32 2147483647, %v823
    %vm834 = vcmp.eq.f32.partialorder %v833, 8.507059e+37
    %v835 = vand.u32 %v823, 2147483648
    %v836 = vor.u32 1.1754944e-38, %v835
    %v837 = vsel %vm834, %v836, %v832
    %v838 = vmul.f32 1.0, %v837
    %v840 = vrot.slane %v819, 6
    %v842 = vtanh.pop %v840
    %v844 = vrot.slane %v838, 2
    %v846 = vmul.f32 %v844, %v748
    %v847 = vmul.f32 %v838, %v842
    %v848 = vadd.f32 %v846, %v847
    %v849 = vtanh.pop %v848
    %v850 = vrot.slane %v838, 4
    %v852 = vmul.f32 %v850, %v849
    %v853 = vmax.f32 %v753, %v852
    %v854 = vld [vmem:[%s412] sm:$0xff]
    %v855 = vpack.c.bf16 %v852, %v852
    %856 = vmatpush.bf16.msra.mxu0 %v620
    %857 = vmatpush.bf16.msra.mxu0 %v616
    %858 = vmatpush.bf16.msra.mxu0 %v612
    %859 = vmatpush.bf16.msra.mxu0 %v608
    %860 = vmatpush.bf16.msra.mxu0 %v604
    %861 = vmatpush.bf16.msra.mxu0 %v600
    %862 = vmatpush.bf16.msra.mxu0 %v596
    %863 = vmatpush.bf16.msra.mxu0 %v592
    %864 = vmatmul.bf16.gmra.mxu0 %v855
    %v865 = vpop.f32.mrf.mxu0
    %v866 = vadd.f32 0.0, %v865
    %v867 = vpop.f32.mrf.mxu0
    %868 = vdwg.mxu0
    %869 = vmatpush.bf16.msra.mxu0 %v621
    %870 = vmatpush.bf16.msra.mxu0 %v617
    %871 = vmatpush.bf16.msra.mxu0 %v613
    %872 = vmatpush.bf16.msra.mxu0 %v609
    %873 = vmatpush.bf16.msra.mxu0 %v605
    %874 = vmatpush.bf16.msra.mxu0 %v601
    %875 = vmatpush.bf16.msra.mxu0 %v597
    %876 = vmatpush.bf16.msra.mxu0 %v593
    %877 = vmatmul.bf16.gmra.mxu0 %v855
    %v878 = vpop.f32.mrf.mxu0
    %v879 = vadd.f32 0.0, %v878
    %v880 = vpop.f32.mrf.mxu0
    %881 = vdwg.mxu0
    %882 = vmatpush.bf16.msra.mxu0 %v622
    %883 = vmatpush.bf16.msra.mxu0 %v618
    %884 = vmatpush.bf16.msra.mxu0 %v614
    %885 = vmatpush.bf16.msra.mxu0 %v610
    %886 = vmatpush.bf16.msra.mxu0 %v606
    %887 = vmatpush.bf16.msra.mxu0 %v602
    %888 = vmatpush.bf16.msra.mxu0 %v598
    %889 = vmatpush.bf16.msra.mxu0 %v594
    %890 = vmatmul.bf16.gmra.mxu0 %v855
    %v891 = vpop.f32.mrf.mxu0
    %v892 = vadd.f32 0.0, %v891
    %v893 = vpop.f32.mrf.mxu0
    %894 = vdwg.mxu0
    %895 = vmatpush.bf16.msra.mxu0 %v623
    %896 = vmatpush.bf16.msra.mxu0 %v619
    %897 = vmatpush.bf16.msra.mxu0 %v615
    %898 = vmatpush.bf16.msra.mxu0 %v611
    %899 = vmatpush.bf16.msra.mxu0 %v607
    %900 = vmatpush.bf16.msra.mxu0 %v603
    %901 = vmatpush.bf16.msra.mxu0 %v599
    %902 = vmatpush.bf16.msra.mxu0 %v595
    %903 = vmatmul.bf16.gmra.mxu0 %v855
    %v904 = vpop.f32.mrf.mxu0
    %v905 = vadd.f32 0.0, %v904
    %v906 = vpop.f32.mrf.mxu0
    %907 = vdwg.mxu0
    %v912 = vrot.slane %v879, 6
    %v913 = vrot.slane %v892, 4
    %v914 = vrot.slane %v905, 2
    %v915 = vsel %vm372, %v866, %v912
    %v916 = vsel %vm374, %v913, %v914
    %v917 = vsel %vm376, %v915, %v916
    %v919 = vadd.f32 %v854, %v917
    %v920 = vxor.u32 %v919, 2147483648
    %v921 = vmul.f32 %v920, 1.442695
    %v922 = vpow.pop %v921
    %v923 = vadd.f32 %v922, 1.0
    %v924 = vrcp.pop %v923
    %v925 = vmul.f32 %v923, %v924
    %v926 = vsub.f32 1.0, %v925
    %v927 = vmul.f32 %v924, %v926
    %v928 = vadd.f32 %v924, %v927
    %vm929 = vweird.f32 %v923
    %vm930 = vweird.f32 %v924
    %vm931 = vmor %vm929, %vm930
    %v932 = vsel %vm931, %v924, %v928
    %v933 = vand.u32 2147483647, %v923
    %vm934 = vcmp.eq.f32.partialorder %v933, 8.507059e+37
    %v935 = vand.u32 %v923, 2147483648
    %v936 = vor.u32 1.1754944e-38, %v935
    %v937 = vsel %vm934, %v936, %v932
    %v938 = vmul.f32 1.0, %v937
    %v940 = vrot.slane %v919, 6
    %v942 = vtanh.pop %v940
    %v944 = vrot.slane %v938, 2
    %v946 = vmul.f32 %v944, %v848
    %v947 = vmul.f32 %v938, %v942
    %v948 = vadd.f32 %v946, %v947
    %v949 = vtanh.pop %v948
    %v950 = vrot.slane %v938, 4
    %v952 = vmul.f32 %v950, %v949
    %v953 = vmax.f32 %v853, %v952
    %v954 = vld [vmem:[%s421] sm:$0xff]
    %v955 = vpack.c.bf16 %v952, %v952
    %956 = vmatpush.bf16.msra.mxu0 %v620
    %957 = vmatpush.bf16.msra.mxu0 %v616
    %958 = vmatpush.bf16.msra.mxu0 %v612
    %959 = vmatpush.bf16.msra.mxu0 %v608
    %960 = vmatpush.bf16.msra.mxu0 %v604
    %961 = vmatpush.bf16.msra.mxu0 %v600
    %962 = vmatpush.bf16.msra.mxu0 %v596
    %963 = vmatpush.bf16.msra.mxu0 %v592
    %964 = vmatmul.bf16.gmra.mxu0 %v955
    %v965 = vpop.f32.mrf.mxu0
    %v966 = vadd.f32 0.0, %v965
    %v967 = vpop.f32.mrf.mxu0
    %968 = vdwg.mxu0
    %969 = vmatpush.bf16.msra.mxu0 %v621
    %970 = vmatpush.bf16.msra.mxu0 %v617
    %971 = vmatpush.bf16.msra.mxu0 %v613
    %972 = vmatpush.bf16.msra.mxu0 %v609
    %973 = vmatpush.bf16.msra.mxu0 %v605
    %974 = vmatpush.bf16.msra.mxu0 %v601
    %975 = vmatpush.bf16.msra.mxu0 %v597
    %976 = vmatpush.bf16.msra.mxu0 %v593
    %977 = vmatmul.bf16.gmra.mxu0 %v955
    %v978 = vpop.f32.mrf.mxu0
    %v979 = vadd.f32 0.0, %v978
    %v980 = vpop.f32.mrf.mxu0
    %981 = vdwg.mxu0
    %982 = vmatpush.bf16.msra.mxu0 %v622
    %983 = vmatpush.bf16.msra.mxu0 %v618
    %984 = vmatpush.bf16.msra.mxu0 %v614
    %985 = vmatpush.bf16.msra.mxu0 %v610
    %986 = vmatpush.bf16.msra.mxu0 %v606
    %987 = vmatpush.bf16.msra.mxu0 %v602
    %988 = vmatpush.bf16.msra.mxu0 %v598
    %989 = vmatpush.bf16.msra.mxu0 %v594
    %990 = vmatmul.bf16.gmra.mxu0 %v955
    %v991 = vpop.f32.mrf.mxu0
    %v992 = vadd.f32 0.0, %v991
    %v993 = vpop.f32.mrf.mxu0
    %994 = vdwg.mxu0
    %995 = vmatpush.bf16.msra.mxu0 %v623
    %996 = vmatpush.bf16.msra.mxu0 %v619
    %997 = vmatpush.bf16.msra.mxu0 %v615
    %998 = vmatpush.bf16.msra.mxu0 %v611
    %999 = vmatpush.bf16.msra.mxu0 %v607
    %1000 = vmatpush.bf16.msra.mxu0 %v603
    %1001 = vmatpush.bf16.msra.mxu0 %v599
    %1002 = vmatpush.bf16.msra.mxu0 %v595
    %1003 = vmatmul.bf16.gmra.mxu0 %v955
    %v1004 = vpop.f32.mrf.mxu0
    %v1005 = vadd.f32 0.0, %v1004
    %v1006 = vpop.f32.mrf.mxu0
    %1007 = vdwg.mxu0
    %v1012 = vrot.slane %v979, 6
    %v1013 = vrot.slane %v992, 4
    %v1014 = vrot.slane %v1005, 2
    %v1015 = vsel %vm372, %v966, %v1012
    %v1016 = vsel %vm374, %v1013, %v1014
    %v1017 = vsel %vm376, %v1015, %v1016
    %v1019 = vadd.f32 %v954, %v1017
    %v1020 = vxor.u32 %v1019, 2147483648
    %v1021 = vmul.f32 %v1020, 1.442695
    %v1022 = vpow.pop %v1021
    %v1023 = vadd.f32 %v1022, 1.0
    %v1024 = vrcp.pop %v1023
    %v1025 = vmul.f32 %v1023, %v1024
    %v1026 = vsub.f32 1.0, %v1025
    %v1027 = vmul.f32 %v1024, %v1026
    %v1028 = vadd.f32 %v1024, %v1027
    %vm1029 = vweird.f32 %v1023
    %vm1030 = vweird.f32 %v1024
    %vm1031 = vmor %vm1029, %vm1030
    %v1032 = vsel %vm1031, %v1024, %v1028
    %v1033 = vand.u32 2147483647, %v1023
    %vm1034 = vcmp.eq.f32.partialorder %v1033, 8.507059e+37
    %v1035 = vand.u32 %v1023, 2147483648
    %v1036 = vor.u32 1.1754944e-38, %v1035
    %v1037 = vsel %vm1034, %v1036, %v1032
    %v1038 = vmul.f32 1.0, %v1037
    %v1040 = vrot.slane %v1019, 6
    %v1042 = vtanh.pop %v1040
    %v1044 = vrot.slane %v1038, 2
    %v1046 = vmul.f32 %v1044, %v948
    %v1047 = vmul.f32 %v1038, %v1042
    %v1048 = vadd.f32 %v1046, %v1047
    %v1049 = vtanh.pop %v1048
    %v1050 = vrot.slane %v1038, 4
    %v1052 = vmul.f32 %v1050, %v1049
    %v1053 = vmax.f32 %v953, %v1052
    %v1054 = vld [vmem:[%s450] sm:$0xff]
    %v1055 = vpack.c.bf16 %v1052, %v1052
    %1056 = vmatpush.bf16.msra.mxu0 %v620
    %1057 = vmatpush.bf16.msra.mxu0 %v616
    %1058 = vmatpush.bf16.msra.mxu0 %v612
    %1059 = vmatpush.bf16.msra.mxu0 %v608
    %1060 = vmatpush.bf16.msra.mxu0 %v604
    %1061 = vmatpush.bf16.msra.mxu0 %v600
    %1062 = vmatpush.bf16.msra.mxu0 %v596
    %1063 = vmatpush.bf16.msra.mxu0 %v592
    %1064 = vmatmul.bf16.gmra.mxu0 %v1055
    %v1065 = vpop.f32.mrf.mxu0
    %v1066 = vadd.f32 0.0, %v1065
    %v1067 = vpop.f32.mrf.mxu0
    %1068 = vdwg.mxu0
    %1069 = vmatpush.bf16.msra.mxu0 %v621
    %1070 = vmatpush.bf16.msra.mxu0 %v617
    %1071 = vmatpush.bf16.msra.mxu0 %v613
    %1072 = vmatpush.bf16.msra.mxu0 %v609
    %1073 = vmatpush.bf16.msra.mxu0 %v605
    %1074 = vmatpush.bf16.msra.mxu0 %v601
    %1075 = vmatpush.bf16.msra.mxu0 %v597
    %1076 = vmatpush.bf16.msra.mxu0 %v593
    %1077 = vmatmul.bf16.gmra.mxu0 %v1055
    %v1078 = vpop.f32.mrf.mxu0
    %v1079 = vadd.f32 0.0, %v1078
    %v1080 = vpop.f32.mrf.mxu0
    %1081 = vdwg.mxu0
    %1082 = vmatpush.bf16.msra.mxu0 %v622
    %1083 = vmatpush.bf16.msra.mxu0 %v618
    %1084 = vmatpush.bf16.msra.mxu0 %v614
    %1085 = vmatpush.bf16.msra.mxu0 %v610
    %1086 = vmatpush.bf16.msra.mxu0 %v606
    %1087 = vmatpush.bf16.msra.mxu0 %v602
    %1088 = vmatpush.bf16.msra.mxu0 %v598
    %1089 = vmatpush.bf16.msra.mxu0 %v594
    %1090 = vmatmul.bf16.gmra.mxu0 %v1055
    %v1091 = vpop.f32.mrf.mxu0
    %v1092 = vadd.f32 0.0, %v1091
    %v1093 = vpop.f32.mrf.mxu0
    %1094 = vdwg.mxu0
    %1095 = vmatpush.bf16.msra.mxu0 %v623
    %1096 = vmatpush.bf16.msra.mxu0 %v619
    %1097 = vmatpush.bf16.msra.mxu0 %v615
    %1098 = vmatpush.bf16.msra.mxu0 %v611
    %1099 = vmatpush.bf16.msra.mxu0 %v607
    %1100 = vmatpush.bf16.msra.mxu0 %v603
    %1101 = vmatpush.bf16.msra.mxu0 %v599
    %1102 = vmatpush.bf16.msra.mxu0 %v595
    %1103 = vmatmul.bf16.gmra.mxu0 %v1055
    %v1104 = vpop.f32.mrf.mxu0
    %v1105 = vadd.f32 0.0, %v1104
    %v1106 = vpop.f32.mrf.mxu0
    %1107 = vdwg.mxu0
    %v1112 = vrot.slane %v1079, 6
    %v1113 = vrot.slane %v1092, 4
    %v1114 = vrot.slane %v1105, 2
    %v1115 = vsel %vm372, %v1066, %v1112
    %v1116 = vsel %vm374, %v1113, %v1114
    %v1117 = vsel %vm376, %v1115, %v1116
    %v1119 = vadd.f32 %v1054, %v1117
    %v1120 = vxor.u32 %v1119, 2147483648
    %v1121 = vmul.f32 %v1120, 1.442695
    %v1122 = vpow.pop %v1121
    %v1123 = vadd.f32 %v1122, 1.0
    %v1124 = vrcp.pop %v1123
    %v1125 = vmul.f32 %v1123, %v1124
    %v1126 = vsub.f32 1.0, %v1125
    %v1127 = vmul.f32 %v1124, %v1126
    %v1128 = vadd.f32 %v1124, %v1127
    %vm1129 = vweird.f32 %v1123
    %vm1130 = vweird.f32 %v1124
    %vm1131 = vmor %vm1129, %vm1130
    %v1132 = vsel %vm1131, %v1124, %v1128
    %v1133 = vand.u32 2147483647, %v1123
    %vm1134 = vcmp.eq.f32.partialorder %v1133, 8.507059e+37
    %v1135 = vand.u32 %v1123, 2147483648
    %v1136 = vor.u32 1.1754944e-38, %v1135
    %v1137 = vsel %vm1134, %v1136, %v1132
    %v1138 = vmul.f32 1.0, %v1137
    %v1140 = vrot.slane %v1119, 6
    %v1142 = vtanh.pop %v1140
    %v1144 = vrot.slane %v1138, 2
    %v1146 = vmul.f32 %v1144, %v1048
    %v1147 = vmul.f32 %v1138, %v1142
    %v1148 = vadd.f32 %v1146, %v1147
    %v1149 = vtanh.pop %v1148
    %v1150 = vrot.slane %v1138, 4
    %v1152 = vmul.f32 %v1150, %v1149
    %v1153 = vmax.f32 %v1053, %v1152
    %v1154 = vld [vmem:[%s475] sm:$0xff]
    %v1155 = vpack.c.bf16 %v1152, %v1152
    %1156 = vmatpush.bf16.msra.mxu0 %v620
    %1157 = vmatpush.bf16.msra.mxu0 %v616
    %1158 = vmatpush.bf16.msra.mxu0 %v612
    %1159 = vmatpush.bf16.msra.mxu0 %v608
    %1160 = vmatpush.bf16.msra.mxu0 %v604
    %1161 = vmatpush.bf16.msra.mxu0 %v600
    %1162 = vmatpush.bf16.msra.mxu0 %v596
    %1163 = vmatpush.bf16.msra.mxu0 %v592
    %1164 = vmatmul.bf16.gmra.mxu0 %v1155
    %v1165 = vpop.f32.mrf.mxu0
    %v1166 = vadd.f32 0.0, %v1165
    %v1167 = vpop.f32.mrf.mxu0
    %1168 = vdwg.mxu0
    %1169 = vmatpush.bf16.msra.mxu0 %v621
    %1170 = vmatpush.bf16.msra.mxu0 %v617
    %1171 = vmatpush.bf16.msra.mxu0 %v613
    %1172 = vmatpush.bf16.msra.mxu0 %v609
    %1173 = vmatpush.bf16.msra.mxu0 %v605
    %1174 = vmatpush.bf16.msra.mxu0 %v601
    %1175 = vmatpush.bf16.msra.mxu0 %v597
    %1176 = vmatpush.bf16.msra.mxu0 %v593
    %1177 = vmatmul.bf16.gmra.mxu0 %v1155
    %v1178 = vpop.f32.mrf.mxu0
    %v1179 = vadd.f32 0.0, %v1178
    %v1180 = vpop.f32.mrf.mxu0
    %1181 = vdwg.mxu0
    %1182 = vmatpush.bf16.msra.mxu0 %v622
    %1183 = vmatpush.bf16.msra.mxu0 %v618
    %1184 = vmatpush.bf16.msra.mxu0 %v614
    %1185 = vmatpush.bf16.msra.mxu0 %v610
    %1186 = vmatpush.bf16.msra.mxu0 %v606
    %1187 = vmatpush.bf16.msra.mxu0 %v602
    %1188 = vmatpush.bf16.msra.mxu0 %v598
    %1189 = vmatpush.bf16.msra.mxu0 %v594
    %1190 = vmatmul.bf16.gmra.mxu0 %v1155
    %v1191 = vpop.f32.mrf.mxu0
    %v1192 = vadd.f32 0.0, %v1191
    %v1193 = vpop.f32.mrf.mxu0
    %1194 = vdwg.mxu0
    %1195 = vmatpush.bf16.msra.mxu0 %v623
    %1196 = vmatpush.bf16.msra.mxu0 %v619
    %1197 = vmatpush.bf16.msra.mxu0 %v615
    %1198 = vmatpush.bf16.msra.mxu0 %v611
    %1199 = vmatpush.bf16.msra.mxu0 %v607
    %1200 = vmatpush.bf16.msra.mxu0 %v603
    %1201 = vmatpush.bf16.msra.mxu0 %v599
    %1202 = vmatpush.bf16.msra.mxu0 %v595
    %1203 = vmatmul.bf16.gmra.mxu0 %v1155
    %v1204 = vpop.f32.mrf.mxu0
    %v1205 = vadd.f32 0.0, %v1204
    %v1206 = vpop.f32.mrf.mxu0
    %1207 = vdwg.mxu0
    %v1212 = vrot.slane %v1179, 6
    %v1213 = vrot.slane %v1192, 4
    %v1214 = vrot.slane %v1205, 2
    %v1215 = vsel %vm372, %v1166, %v1212
    %v1216 = vsel %vm374, %v1213, %v1214
    %v1217 = vsel %vm376, %v1215, %v1216
    %v1219 = vadd.f32 %v1154, %v1217
    %v1220 = vxor.u32 %v1219, 2147483648
    %v1221 = vmul.f32 %v1220, 1.442695
    %v1222 = vpow.pop %v1221
    %v1223 = vadd.f32 %v1222, 1.0
    %v1224 = vrcp.pop %v1223
    %v1225 = vmul.f32 %v1223, %v1224
    %v1226 = vsub.f32 1.0, %v1225
    %v1227 = vmul.f32 %v1224, %v1226
    %v1228 = vadd.f32 %v1224, %v1227
    %vm1229 = vweird.f32 %v1223
    %vm1230 = vweird.f32 %v1224
    %vm1231 = vmor %vm1229, %vm1230
    %v1232 = vsel %vm1231, %v1224, %v1228
    %v1233 = vand.u32 2147483647, %v1223
    %vm1234 = vcmp.eq.f32.partialorder %v1233, 8.507059e+37
    %v1235 = vand.u32 %v1223, 2147483648
    %v1236 = vor.u32 1.1754944e-38, %v1235
    %v1237 = vsel %vm1234, %v1236, %v1232
    %v1238 = vmul.f32 1.0, %v1237
    %v1240 = vrot.slane %v1219, 6
    %v1242 = vtanh.pop %v1240
    %v1244 = vrot.slane %v1238, 2
    %v1246 = vmul.f32 %v1244, %v1148
    %v1247 = vmul.f32 %v1238, %v1242
    %v1248 = vadd.f32 %v1246, %v1247
    %v1249 = vtanh.pop %v1248
    %v1250 = vrot.slane %v1238, 4
    %v1252 = vmul.f32 %v1250, %v1249
    %v1253 = vmax.f32 %v1153, %v1252
    %v1254 = vld [vmem:[%s484] sm:$0xff]
    %v1255 = vpack.c.bf16 %v1252, %v1252
    %1256 = vmatpush.bf16.msra.mxu0 %v620
    %1257 = vmatpush.bf16.msra.mxu0 %v616
    %1258 = vmatpush.bf16.msra.mxu0 %v612
    %1259 = vmatpush.bf16.msra.mxu0 %v608
    %1260 = vmatpush.bf16.msra.mxu0 %v604
    %1261 = vmatpush.bf16.msra.mxu0 %v600
    %1262 = vmatpush.bf16.msra.mxu0 %v596
    %1263 = vmatpush.bf16.msra.mxu0 %v592
    %1264 = vmatmul.bf16.gmra.mxu0 %v1255
    %v1265 = vpop.f32.mrf.mxu0
    %v1266 = vadd.f32 0.0, %v1265
    %v1267 = vpop.f32.mrf.mxu0
    %1268 = vdwg.mxu0
    %1269 = vmatpush.bf16.msra.mxu0 %v621
    %1270 = vmatpush.bf16.msra.mxu0 %v617
    %1271 = vmatpush.bf16.msra.mxu0 %v613
    %1272 = vmatpush.bf16.msra.mxu0 %v609
    %1273 = vmatpush.bf16.msra.mxu0 %v605
    %1274 = vmatpush.bf16.msra.mxu0 %v601
    %1275 = vmatpush.bf16.msra.mxu0 %v597
    %1276 = vmatpush.bf16.msra.mxu0 %v593
    %1277 = vmatmul.bf16.gmra.mxu0 %v1255
    %v1278 = vpop.f32.mrf.mxu0
    %v1279 = vadd.f32 0.0, %v1278
    %v1280 = vpop.f32.mrf.mxu0
    %1281 = vdwg.mxu0
    %1282 = vmatpush.bf16.msra.mxu0 %v622
    %1283 = vmatpush.bf16.msra.mxu0 %v618
    %1284 = vmatpush.bf16.msra.mxu0 %v614
    %1285 = vmatpush.bf16.msra.mxu0 %v610
    %1286 = vmatpush.bf16.msra.mxu0 %v606
    %1287 = vmatpush.bf16.msra.mxu0 %v602
    %1288 = vmatpush.bf16.msra.mxu0 %v598
    %1289 = vmatpush.bf16.msra.mxu0 %v594
    %1290 = vmatmul.bf16.gmra.mxu0 %v1255
    %v1291 = vpop.f32.mrf.mxu0
    %v1292 = vadd.f32 0.0, %v1291
    %v1293 = vpop.f32.mrf.mxu0
    %1294 = vdwg.mxu0
    %1295 = vmatpush.bf16.msra.mxu0 %v623
    %1296 = vmatpush.bf16.msra.mxu0 %v619
    %1297 = vmatpush.bf16.msra.mxu0 %v615
    %1298 = vmatpush.bf16.msra.mxu0 %v611
    %1299 = vmatpush.bf16.msra.mxu0 %v607
    %1300 = vmatpush.bf16.msra.mxu0 %v603
    %1301 = vmatpush.bf16.msra.mxu0 %v599
    %1302 = vmatpush.bf16.msra.mxu0 %v595
    %1303 = vmatmul.bf16.gmra.mxu0 %v1255
    %v1304 = vpop.f32.mrf.mxu0
    %v1305 = vadd.f32 0.0, %v1304
    %v1306 = vpop.f32.mrf.mxu0
    %1307 = vdwg.mxu0
    %v1312 = vrot.slane %v1279, 6
    %v1313 = vrot.slane %v1292, 4
    %v1314 = vrot.slane %v1305, 2
    %v1315 = vsel %vm372, %v1266, %v1312
    %v1316 = vsel %vm374, %v1313, %v1314
    %v1317 = vsel %vm376, %v1315, %v1316
    %v1319 = vadd.f32 %v1254, %v1317
    %v1320 = vxor.u32 %v1319, 2147483648
    %v1321 = vmul.f32 %v1320, 1.442695
    %v1322 = vpow.pop %v1321
    %v1323 = vadd.f32 %v1322, 1.0
    %v1324 = vrcp.pop %v1323
    %v1325 = vmul.f32 %v1323, %v1324
    %v1326 = vsub.f32 1.0, %v1325
    %v1327 = vmul.f32 %v1324, %v1326
    %v1328 = vadd.f32 %v1324, %v1327
    %vm1329 = vweird.f32 %v1323
    %vm1330 = vweird.f32 %v1324
    %vm1331 = vmor %vm1329, %vm1330
    %v1332 = vsel %vm1331, %v1324, %v1328
    %v1333 = vand.u32 2147483647, %v1323
    %vm1334 = vcmp.eq.f32.partialorder %v1333, 8.507059e+37
    %v1335 = vand.u32 %v1323, 2147483648
    %v1336 = vor.u32 1.1754944e-38, %v1335
    %v1337 = vsel %vm1334, %v1336, %v1332
    %v1338 = vmul.f32 1.0, %v1337
    %v1340 = vrot.slane %v1319, 6
    %v1342 = vtanh.pop %v1340
    %v1344 = vrot.slane %v1338, 2
    %v1346 = vmul.f32 %v1344, %v1248
    %v1347 = vmul.f32 %v1338, %v1342
    %v1348 = vadd.f32 %v1346, %v1347
    %v1349 = vtanh.pop %v1348
    %v1350 = vrot.slane %v1338, 4
    %v1352 = vmul.f32 %v1350, %v1349
    %v1353 = vmax.f32 %v1253, %v1352
    %v1354 = vld [vmem:[%s493] sm:$0xff]
    %v1355 = vpack.c.bf16 %v1352, %v1352
    %1356 = vmatpush.bf16.msra.mxu0 %v620
    %1357 = vmatpush.bf16.msra.mxu0 %v616
    %1358 = vmatpush.bf16.msra.mxu0 %v612
    %1359 = vmatpush.bf16.msra.mxu0 %v608
    %1360 = vmatpush.bf16.msra.mxu0 %v604
    %1361 = vmatpush.bf16.msra.mxu0 %v600
    %1362 = vmatpush.bf16.msra.mxu0 %v596
    %1363 = vmatpush.bf16.msra.mxu0 %v592
    %1364 = vmatmul.bf16.gmra.mxu0 %v1355
    %v1365 = vpop.f32.mrf.mxu0
    %v1366 = vadd.f32 0.0, %v1365
    %v1367 = vpop.f32.mrf.mxu0
    %1368 = vdwg.mxu0
    %1369 = vmatpush.bf16.msra.mxu0 %v621
    %1370 = vmatpush.bf16.msra.mxu0 %v617
    %1371 = vmatpush.bf16.msra.mxu0 %v613
    %1372 = vmatpush.bf16.msra.mxu0 %v609
    %1373 = vmatpush.bf16.msra.mxu0 %v605
    %1374 = vmatpush.bf16.msra.mxu0 %v601
    %1375 = vmatpush.bf16.msra.mxu0 %v597
    %1376 = vmatpush.bf16.msra.mxu0 %v593
    %1377 = vmatmul.bf16.gmra.mxu0 %v1355
    %v1378 = vpop.f32.mrf.mxu0
    %v1379 = vadd.f32 0.0, %v1378
    %v1380 = vpop.f32.mrf.mxu0
    %1381 = vdwg.mxu0
    %1382 = vmatpush.bf16.msra.mxu0 %v622
    %1383 = vmatpush.bf16.msra.mxu0 %v618
    %1384 = vmatpush.bf16.msra.mxu0 %v614
    %1385 = vmatpush.bf16.msra.mxu0 %v610
    %1386 = vmatpush.bf16.msra.mxu0 %v606
    %1387 = vmatpush.bf16.msra.mxu0 %v602
    %1388 = vmatpush.bf16.msra.mxu0 %v598
    %1389 = vmatpush.bf16.msra.mxu0 %v594
    %1390 = vmatmul.bf16.gmra.mxu0 %v1355
    %v1391 = vpop.f32.mrf.mxu0
    %v1392 = vadd.f32 0.0, %v1391
    %v1393 = vpop.f32.mrf.mxu0
    %1394 = vdwg.mxu0
    %1395 = vmatpush.bf16.msra.mxu0 %v623
    %1396 = vmatpush.bf16.msra.mxu0 %v619
    %1397 = vmatpush.bf16.msra.mxu0 %v615
    %1398 = vmatpush.bf16.msra.mxu0 %v611
    %1399 = vmatpush.bf16.msra.mxu0 %v607
    %1400 = vmatpush.bf16.msra.mxu0 %v603
    %1401 = vmatpush.bf16.msra.mxu0 %v599
    %1402 = vmatpush.bf16.msra.mxu0 %v595
    %1403 = vmatmul.bf16.gmra.mxu0 %v1355
    %v1404 = vpop.f32.mrf.mxu0
    %v1405 = vadd.f32 0.0, %v1404
    %v1406 = vpop.f32.mrf.mxu0
    %1407 = vdwg.mxu0
    %v1412 = vrot.slane %v1379, 6
    %v1413 = vrot.slane %v1392, 4
    %v1414 = vrot.slane %v1405, 2
    %v1415 = vsel %vm372, %v1366, %v1412
    %v1416 = vsel %vm374, %v1413, %v1414
    %v1417 = vsel %vm376, %v1415, %v1416
    %v1419 = vadd.f32 %v1354, %v1417
    %v1420 = vxor.u32 %v1419, 2147483648
    %v1421 = vmul.f32 %v1420, 1.442695
    %v1422 = vpow.pop %v1421
    %v1423 = vadd.f32 %v1422, 1.0
    %v1424 = vrcp.pop %v1423
    %v1425 = vmul.f32 %v1423, %v1424
    %v1426 = vsub.f32 1.0, %v1425
    %v1427 = vmul.f32 %v1424, %v1426
    %v1428 = vadd.f32 %v1424, %v1427
    %vm1429 = vweird.f32 %v1423
    %vm1430 = vweird.f32 %v1424
    %vm1431 = vmor %vm1429, %vm1430
    %v1432 = vsel %vm1431, %v1424, %v1428
    %v1433 = vand.u32 2147483647, %v1423
    %vm1434 = vcmp.eq.f32.partialorder %v1433, 8.507059e+37
    %v1435 = vand.u32 %v1423, 2147483648
    %v1436 = vor.u32 1.1754944e-38, %v1435
    %v1437 = vsel %vm1434, %v1436, %v1432
    %v1438 = vmul.f32 1.0, %v1437
    %v1440 = vrot.slane %v1419, 6
    %v1442 = vtanh.pop %v1440
    %v1444 = vrot.slane %v1438, 2
    %v1446 = vmul.f32 %v1444, %v1348
    %v1447 = vmul.f32 %v1438, %v1442
    %v1448 = vadd.f32 %v1446, %v1447
    %v1449 = vtanh.pop %v1448
    %v1450 = vrot.slane %v1438, 4
    %v1452 = vmul.f32 %v1450, %v1449
    %v1453 = vmax.f32 %v1353, %v1452
    %v1454 = vmax.f32 %v92, 0.0
    %v1456 = vrot.slane %v92, 2
    %v1458 = vmax.f32 %v1454, %v1456
    %v1459 = vrot.slane %v92, 4
    %v1461 = vmax.f32 %v1458, %v1459
    %v1462 = vrot.slane %v92, 6
    %v1464 = vmax.f32 %v1461, %v1462
    %v1465 = vmax.f32 %v1464, %v93
    %v1467 = vrot.slane %v93, 2
    %v1469 = vmax.f32 %v1465, %v1467
    %v1470 = vrot.slane %v93, 4
    %v1472 = vmax.f32 %v1469, %v1470
    %v1473 = vrot.slane %v93, 6
    %v1475 = vmax.f32 %v1472, %v1473
    %v1476 = vld [vmem:[%s5] sm:$0xff]
    %v1477 = vld [vmem:[%s5 + $0x8] sm:$0xff]
    %v1478 = vld [vmem:[%s5 + $0x10] sm:$0xff]
    %v1479 = vld [vmem:[%s5 + $0x18] sm:$0xff]
    %v1480 = vld [vmem:[#allocation9] sm:$0xff]
    %v1481 = vld [vmem:[#allocation9 + $0x8] sm:$0xff]
    %v1482 = vld [vmem:[#allocation9 + $0x10] sm:$0xff]
    %v1483 = vld [vmem:[#allocation9 + $0x18] sm:$0xff]
    %v1484 = vld [vmem:[#allocation9 + $0x20] sm:$0xff]
    %v1485 = vld [vmem:[#allocation9 + $0x28] sm:$0xff]
    %v1486 = vld [vmem:[#allocation9 + $0x30] sm:$0xff]
    %v1487 = vld [vmem:[#allocation9 + $0x38] sm:$0xff]
    %v1488 = vld [vmem:[#allocation9 + $0x40] sm:$0xff]
    %v1489 = vld [vmem:[#allocation9 + $0x48] sm:$0xff]
    %v1490 = vld [vmem:[#allocation9 + $0x50] sm:$0xff]
    %v1491 = vld [vmem:[#allocation9 + $0x58] sm:$0xff]
    %v1492 = vld [vmem:[#allocation9 + $0x60] sm:$0xff]
    %v1493 = vld [vmem:[#allocation9 + $0x68] sm:$0xff]
    %v1494 = vld [vmem:[#allocation9 + $0x70] sm:$0xff]
    %v1495 = vld [vmem:[#allocation9 + $0x78] sm:$0xff]
    %1496 = vmatpush.msra.mxu0 %v1495
    %1497 = vmatpush.msra.mxu0 %v1494
    %1498 = vmatpush.msra.mxu0 %v1493
    %1499 = vmatpush.msra.mxu0 %v1492
    %1500 = vmatpush.msra.mxu0 %v1491
    %1501 = vmatpush.msra.mxu0 %v1490
    %1502 = vmatpush.msra.mxu0 %v1489
    %1503 = vmatpush.msra.mxu0 %v1488
    %1504 = vmatpush.msra.mxu0 %v1487
    %1505 = vmatpush.msra.mxu0 %v1486
    %1506 = vmatpush.msra.mxu0 %v1485
    %1507 = vmatpush.msra.mxu0 %v1484
    %1508 = vmatpush.msra.mxu0 %v1483
    %1509 = vmatpush.msra.mxu0 %v1482
    %1510 = vmatpush.msra.mxu0 %v1481
    %1511 = vmatpush.msra.mxu0 %v1480
    %1512 = vmatmul.f32.gmra.mxu0 %v1453
    %v1513 = vpop.f32.mrf.mxu0
    %v1514 = vadd.f32 0.0, %v1513
    %1515 = vdwg.mxu0
    %v1517 = vsel %vm185, %v1475, 0
    %1519 = vmatpush.msra.mxu0 0.0
    %1520 = vmatpush.msra.mxu0 0.0
    %1521 = vmatpush.msra.mxu0 0.0
    %1522 = vmatpush.msra.mxu0 0.0
    %1523 = vmatpush.msra.mxu0 0.0
    %1524 = vmatpush.msra.mxu0 0.0
    %1525 = vmatpush.msra.mxu0 0.0
    %1526 = vmatpush.msra.mxu0 0.0
    %1527 = vmatpush.msra.mxu0 0.0
    %1528 = vmatpush.msra.mxu0 0.0
    %1529 = vmatpush.msra.mxu0 0.0
    %1530 = vmatpush.msra.mxu0 0.0
    %1531 = vmatpush.msra.mxu0 %v1479
    %1532 = vmatpush.msra.mxu0 %v1478
    %1533 = vmatpush.msra.mxu0 %v1477
    %1534 = vmatpush.msra.mxu0 %v1476
    %1535 = vmatmul.f32.gmra.mxu0 %v1517
    %v1536 = vpop.f32.mrf.mxu0
    %v1537 = vadd.f32 %v1514, %v1536
    %1538 = vdwg.mxu0
    %v1539 = vld [vmem:[%s7] sm:$0x1]
    %v1541 = vperm.slane %v1539, 0
    %v1543 = vadd.f32 %v1537, %v1541
    %1544 = vst [vmem:[#allocation11] sm:$0x3] %v1543
    // Predicated region
    $region50: #{rcnn_forward.1} parent=1 // pred_check
      _
    $region51: #{rcnn_forward.1} parent=1 // pred_check_branch
      %1546 = sbr.rel (0) target = $region53
    $region52: #{rcnn_forward.1} parent=1 // pred_region
      %1548 = vsyncadd [#allocation5], 0
      %s1550 = sshll.u32 [#allocation11], 4
      %s1551 = int_to_ptr.vmem [resolvable:$true] %s1550
      %s1552 = sshll.u32 %s8, 4
      %s1553 = int_to_ptr.hbm [resolvable:$true] %s1552
      %1555 = dma.vmem_to_hbm [thread:$0]  %s1551, 32, %s1553, [#allocation5]
    $region53: #{rcnn_forward.1} parent=1 // pred_fallthru
      _
    // Predicated region
    $region54: #{rcnn_forward.1} parent=1 // pred_check
      _
    $region55: #{rcnn_forward.1} parent=1 // pred_check_branch
      %1557 = sbr.rel (0) target = $region57
    $region56: #{rcnn_forward.1} parent=1 // pred_region
      %1559 = dma.done [#allocation5], 32
    $region57: #{rcnn_forward.1} parent=1 // pred_fallthru
      _
    %1560 = vsyncpa [#allocation4], 1
    %1561 = vsyncpa [#allocation7], 1
    %1562 = vsyncpa [#allocation10], 1
    %1563 = vsyncpa [#allocation5], 1

</llo_original>
